<compile_context>
chip_gen: v7x
topology: tpu7x:2x2x1
jax: 0.10.0
libtpu: 0.0.40
codegen_flags: <defaults>
</compile_context>

<pallas_src>
import jax
import jax.numpy as jnp
from jax.experimental import pallas as pl
from jax.experimental.pallas import tpu as pltpu


def _sepconv_swish_kernel(x_ref, wdw_ref, wpw_ref, b_ref, o_ref):
    """Fused depthwise conv + pointwise conv + bias + Swish for one image.

    x_ref  : (1, Hp, Wp, C)  spatially padded NHWC input block
    wdw_ref: (K, K, C)       depthwise weights (one KxK filter per channel)
    wpw_ref: (C, Cout)       pointwise 1x1 weights
    b_ref  : (1, Cout)       pointwise bias
    o_ref  : (1, H*W, Cout)  output block (NHWC, spatial flattened)
    """
    K = wdw_ref.shape[0]
    C = wdw_ref.shape[2]
    Hp, Wp = x_ref.shape[1], x_ref.shape[2]
    H, W = Hp - (K - 1), Wp - (K - 1)

    # --- depthwise KxK conv: K*K shifted taps, f32 accumulation on the VPU.
    wdw = wdw_ref[...].astype(jnp.float32)                  # (K, K, C)
    acc = jnp.zeros((H, W, C), jnp.float32)
    for dy in range(K):            # static unroll (K == 3 -> 9 taps)
        for dx in range(K):
            tap = x_ref[0, dy:dy + H, dx:dx + W, :].astype(jnp.float32)
            acc = acc + tap * wdw[dy, dx, :]                # (C,) lane bcast

    # --- pointwise 1x1 conv (+ bias) as an f32 MXU matmul over channels.
    dw_flat = acc.reshape(H * W, C)                         # collapse H into rows
    pw = jnp.dot(dw_flat, wpw_ref[...].astype(jnp.float32),
                 preferred_element_type=jnp.float32)        # (H*W, Cout)
    pw = pw + b_ref[...].astype(jnp.float32)                # (1, Cout) bcast

    # --- fused Swish epilogue: y = x * sigmoid(x).
    y = pw * jax.nn.sigmoid(pw)
    o_ref[0] = y.astype(o_ref.dtype)


def separable_conv2d_swish(x, w_dw, w_pw, b_pw):
    """Forward pass of SeparableConv2d (PyTorch NCHW semantics).

    x    : (N, C, H, W)     input, NCHW
    w_dw : (C, 1, K, K)     depthwise conv weight (PyTorch layout, groups=C)
    w_pw : (Cout, C, 1, 1)  pointwise conv weight (PyTorch layout)
    b_pw : (Cout,)          pointwise conv bias
    returns (N, Cout, H, W)
    """
    N, C, H, W = x.shape
    Cout = w_pw.shape[0]
    K = w_dw.shape[-1]
    pad = K // 2
    Hp, Wp = H + 2 * pad, W + 2 * pad

    # Layout plumbing only: NCHW -> NHWC (channels on lanes) + "same" padding.
    # (Keeping activations NHWC end-to-end would remove these two passes.)
    x_nhwc = jnp.transpose(x, (0, 2, 3, 1))
    xp = jnp.pad(x_nhwc, ((0, 0), (pad, pad), (pad, pad), (0, 0)))

    wdw = jnp.transpose(w_dw[:, 0], (1, 2, 0))              # (K, K, C)
    wpw = jnp.transpose(w_pw[:, :, 0, 0], (1, 0))           # (C, Cout)
    b2d = b_pw.reshape(1, Cout)

    out = pl.pallas_call(
        _sepconv_swish_kernel,
        out_shape=jax.ShapeDtypeStruct((N, H * W, Cout), x.dtype),
        grid_spec=pltpu.PrefetchScalarGridSpec(
            num_scalar_prefetch=0,
            grid=(N,),
            in_specs=[
                pl.BlockSpec((1, Hp, Wp, C), lambda n: (n, 0, 0, 0)),
                pl.BlockSpec((K, K, C), lambda n: (0, 0, 0)),
                pl.BlockSpec((C, Cout), lambda n: (0, 0)),
                pl.BlockSpec((1, Cout), lambda n: (0, 0)),
            ],
            out_specs=pl.BlockSpec((1, H * W, Cout), lambda n: (n, 0, 0)),
        ),
        compiler_params=pltpu.CompilerParams(
            dimension_semantics=("parallel",),
        ),
    )(xp, wdw, wpw, b2d)

    # Back to the module's NCHW output layout.
    return jnp.transpose(out.reshape(N, H, W, Cout), (0, 3, 1, 2))


if __name__ == "__main__":
    key = jax.random.PRNGKey(0)
    kx, kd, kp, kb = jax.random.split(key, 4)

    N, C, H, W = 2, 4, 16, 16          # in_channels == out_channels (BiFPN)
    Cout, K = 4, 3

    x = jax.random.normal(kx, (N, C, H, W), dtype=jnp.float32)
    w_dw = 0.1 * jax.random.normal(kd, (C, 1, K, K), dtype=jnp.float32)
    w_pw = 0.1 * jax.random.normal(kp, (Cout, C, 1, 1), dtype=jnp.float32)
    b_pw = 0.1 * jax.random.normal(kb, (Cout,), dtype=jnp.float32)

    fwd = jax.jit(separable_conv2d_swish)
    out = fwd(x, w_dw, w_pw, b_pw)
    jax.block_until_ready(out)

    # Pure-JAX reference with the exact PyTorch conv semantics.
    dw_ref = jax.lax.conv_general_dilated(
        x, w_dw, window_strides=(1, 1), padding=((1, 1), (1, 1)),
        dimension_numbers=("NCHW", "OIHW", "NCHW"),
        feature_group_count=C, precision=jax.lax.Precision.HIGHEST)
    pw_ref = jax.lax.conv_general_dilated(
        dw_ref, w_pw, window_strides=(1, 1), padding=((0, 0), (0, 0)),
        dimension_numbers=("NCHW", "OIHW", "NCHW"),
        precision=jax.lax.Precision.HIGHEST)
    pw_ref = pw_ref + b_pw[None, :, None, None]
    ref = pw_ref * jax.nn.sigmoid(pw_ref)

    assert out.shape == (N, Cout, H, W) and out.dtype == x.dtype
    max_err = float(jnp.max(jnp.abs(out - ref)))
    assert max_err < 1e-3, f"max abs err {max_err}"

    print("KERNEL_OK")
</pallas_src>

<mosaic_0001>
module attributes {stable_mosaic.version = 11 : i64} {
  func.func @_sepconv_swish_kernel(%arg0: i32, %arg1: memref<1x18x18x4xf32, #tpu.memory_space<vmem>>, %arg2: memref<3x3x4xf32, #tpu.memory_space<vmem>>, %arg3: memref<4x4xf32, #tpu.memory_space<vmem>>, %arg4: memref<1x4xf32, #tpu.memory_space<vmem>>, %arg5: memref<1x256x4xf32, #tpu.memory_space<vmem>>) attributes {dimension_semantics = [#tpu.dimension_semantics<parallel>], iteration_bounds = array<i64: 2>, scalar_prefetch = 0 : i64, scratch_operands = 0 : i64, tpu.core_type = #tpu.core_type<tc>, window_params = [{transform_indices = @transform_0, window_bounds = array<i64: 1, 18, 18, 4>}, {pipeline_mode = #tpu.pipeline_mode<synchronous>, transform_indices = @transform_1, window_bounds = array<i64: 3, 3, 4>}, {pipeline_mode = #tpu.pipeline_mode<synchronous>, transform_indices = @transform_2, window_bounds = array<i64: 4, 4>}, {pipeline_mode = #tpu.pipeline_mode<synchronous>, transform_indices = @transform_3, window_bounds = array<i64: 1, 4>}, {transform_indices = @transform_4, window_bounds = array<i64: 1, 256, 4>}]} {
    %c0 = arith.constant 0 : index
    %c0_0 = arith.constant 0 : index
    %c0_1 = arith.constant 0 : index
    %0 = vector.load %arg2[%c0, %c0_0, %c0_1] : memref<3x3x4xf32, #tpu.memory_space<vmem>>, vector<3x3x4xf32>
    %cst = arith.constant 0.000000e+00 : f32
    %1 = vector.broadcast %cst : f32 to vector<16x16x4xf32>
    %c0_2 = arith.constant 0 : index
    %c0_3 = arith.constant 0 : index
    %c0_4 = arith.constant 0 : index
    %c0_5 = arith.constant 0 : index
    %2 = vector.load %arg1[%c0_2, %c0_3, %c0_4, %c0_5] : memref<1x18x18x4xf32, #tpu.memory_space<vmem>>, vector<1x16x16x4xf32>
    %3 = vector.shape_cast %2 : vector<1x16x16x4xf32> to vector<16x16x4xf32>
    %4 = vector.extract_strided_slice %0 {offsets = [0, 0, 0], sizes = [1, 1, 4], strides = [1, 1, 1]} : vector<3x3x4xf32> to vector<1x1x4xf32>
    %5 = vector.shape_cast %4 : vector<1x1x4xf32> to vector<4xf32>
    %6 = vector.shape_cast %5 : vector<4xf32> to vector<1x1x4xf32>
    %7 = vector.broadcast %6 : vector<1x1x4xf32> to vector<16x16x4xf32>
    %8 = arith.mulf %3, %7 : vector<16x16x4xf32>
    %9 = arith.addf %1, %8 : vector<16x16x4xf32>
    %c0_6 = arith.constant 0 : index
    %c0_7 = arith.constant 0 : index
    %c1 = arith.constant 1 : index
    %c0_8 = arith.constant 0 : index
    %10 = vector.load %arg1[%c0_6, %c0_7, %c1, %c0_8] : memref<1x18x18x4xf32, #tpu.memory_space<vmem>>, vector<1x16x16x4xf32>
    %11 = vector.shape_cast %10 : vector<1x16x16x4xf32> to vector<16x16x4xf32>
    %12 = vector.extract_strided_slice %0 {offsets = [0, 1, 0], sizes = [1, 1, 4], strides = [1, 1, 1]} : vector<3x3x4xf32> to vector<1x1x4xf32>
    %13 = vector.shape_cast %12 : vector<1x1x4xf32> to vector<4xf32>
    %14 = vector.shape_cast %13 : vector<4xf32> to vector<1x1x4xf32>
    %15 = vector.broadcast %14 : vector<1x1x4xf32> to vector<16x16x4xf32>
    %16 = arith.mulf %11, %15 : vector<16x16x4xf32>
    %17 = arith.addf %9, %16 : vector<16x16x4xf32>
    %c0_9 = arith.constant 0 : index
    %c0_10 = arith.constant 0 : index
    %c2 = arith.constant 2 : index
    %c0_11 = arith.constant 0 : index
    %18 = vector.load %arg1[%c0_9, %c0_10, %c2, %c0_11] : memref<1x18x18x4xf32, #tpu.memory_space<vmem>>, vector<1x16x16x4xf32>
    %19 = vector.shape_cast %18 : vector<1x16x16x4xf32> to vector<16x16x4xf32>
    %20 = vector.extract_strided_slice %0 {offsets = [0, 2, 0], sizes = [1, 1, 4], strides = [1, 1, 1]} : vector<3x3x4xf32> to vector<1x1x4xf32>
    %21 = vector.shape_cast %20 : vector<1x1x4xf32> to vector<4xf32>
    %22 = vector.shape_cast %21 : vector<4xf32> to vector<1x1x4xf32>
    %23 = vector.broadcast %22 : vector<1x1x4xf32> to vector<16x16x4xf32>
    %24 = arith.mulf %19, %23 : vector<16x16x4xf32>
    %25 = arith.addf %17, %24 : vector<16x16x4xf32>
    %c0_12 = arith.constant 0 : index
    %c1_13 = arith.constant 1 : index
    %c0_14 = arith.constant 0 : index
    %c0_15 = arith.constant 0 : index
    %26 = vector.load %arg1[%c0_12, %c1_13, %c0_14, %c0_15] : memref<1x18x18x4xf32, #tpu.memory_space<vmem>>, vector<1x16x16x4xf32>
    %27 = vector.shape_cast %26 : vector<1x16x16x4xf32> to vector<16x16x4xf32>
    %28 = vector.extract_strided_slice %0 {offsets = [1, 0, 0], sizes = [1, 1, 4], strides = [1, 1, 1]} : vector<3x3x4xf32> to vector<1x1x4xf32>
    %29 = vector.shape_cast %28 : vector<1x1x4xf32> to vector<4xf32>
    %30 = vector.shape_cast %29 : vector<4xf32> to vector<1x1x4xf32>
    %31 = vector.broadcast %30 : vector<1x1x4xf32> to vector<16x16x4xf32>
    %32 = arith.mulf %27, %31 : vector<16x16x4xf32>
    %33 = arith.addf %25, %32 : vector<16x16x4xf32>
    %c0_16 = arith.constant 0 : index
    %c1_17 = arith.constant 1 : index
    %c1_18 = arith.constant 1 : index
    %c0_19 = arith.constant 0 : index
    %34 = vector.load %arg1[%c0_16, %c1_17, %c1_18, %c0_19] : memref<1x18x18x4xf32, #tpu.memory_space<vmem>>, vector<1x16x16x4xf32>
    %35 = vector.shape_cast %34 : vector<1x16x16x4xf32> to vector<16x16x4xf32>
    %36 = vector.extract_strided_slice %0 {offsets = [1, 1, 0], sizes = [1, 1, 4], strides = [1, 1, 1]} : vector<3x3x4xf32> to vector<1x1x4xf32>
    %37 = vector.shape_cast %36 : vector<1x1x4xf32> to vector<4xf32>
    %38 = vector.shape_cast %37 : vector<4xf32> to vector<1x1x4xf32>
    %39 = vector.broadcast %38 : vector<1x1x4xf32> to vector<16x16x4xf32>
    %40 = arith.mulf %35, %39 : vector<16x16x4xf32>
    %41 = arith.addf %33, %40 : vector<16x16x4xf32>
    %c0_20 = arith.constant 0 : index
    %c1_21 = arith.constant 1 : index
    %c2_22 = arith.constant 2 : index
    %c0_23 = arith.constant 0 : index
    %42 = vector.load %arg1[%c0_20, %c1_21, %c2_22, %c0_23] : memref<1x18x18x4xf32, #tpu.memory_space<vmem>>, vector<1x16x16x4xf32>
    %43 = vector.shape_cast %42 : vector<1x16x16x4xf32> to vector<16x16x4xf32>
    %44 = vector.extract_strided_slice %0 {offsets = [1, 2, 0], sizes = [1, 1, 4], strides = [1, 1, 1]} : vector<3x3x4xf32> to vector<1x1x4xf32>
    %45 = vector.shape_cast %44 : vector<1x1x4xf32> to vector<4xf32>
    %46 = vector.shape_cast %45 : vector<4xf32> to vector<1x1x4xf32>
    %47 = vector.broadcast %46 : vector<1x1x4xf32> to vector<16x16x4xf32>
    %48 = arith.mulf %43, %47 : vector<16x16x4xf32>
    %49 = arith.addf %41, %48 : vector<16x16x4xf32>
    %c0_24 = arith.constant 0 : index
    %c2_25 = arith.constant 2 : index
    %c0_26 = arith.constant 0 : index
    %c0_27 = arith.constant 0 : index
    %50 = vector.load %arg1[%c0_24, %c2_25, %c0_26, %c0_27] : memref<1x18x18x4xf32, #tpu.memory_space<vmem>>, vector<1x16x16x4xf32>
    %51 = vector.shape_cast %50 : vector<1x16x16x4xf32> to vector<16x16x4xf32>
    %52 = vector.extract_strided_slice %0 {offsets = [2, 0, 0], sizes = [1, 1, 4], strides = [1, 1, 1]} : vector<3x3x4xf32> to vector<1x1x4xf32>
    %53 = vector.shape_cast %52 : vector<1x1x4xf32> to vector<4xf32>
    %54 = vector.shape_cast %53 : vector<4xf32> to vector<1x1x4xf32>
    %55 = vector.broadcast %54 : vector<1x1x4xf32> to vector<16x16x4xf32>
    %56 = arith.mulf %51, %55 : vector<16x16x4xf32>
    %57 = arith.addf %49, %56 : vector<16x16x4xf32>
    %c0_28 = arith.constant 0 : index
    %c2_29 = arith.constant 2 : index
    %c1_30 = arith.constant 1 : index
    %c0_31 = arith.constant 0 : index
    %58 = vector.load %arg1[%c0_28, %c2_29, %c1_30, %c0_31] : memref<1x18x18x4xf32, #tpu.memory_space<vmem>>, vector<1x16x16x4xf32>
    %59 = vector.shape_cast %58 : vector<1x16x16x4xf32> to vector<16x16x4xf32>
    %60 = vector.extract_strided_slice %0 {offsets = [2, 1, 0], sizes = [1, 1, 4], strides = [1, 1, 1]} : vector<3x3x4xf32> to vector<1x1x4xf32>
    %61 = vector.shape_cast %60 : vector<1x1x4xf32> to vector<4xf32>
    %62 = vector.shape_cast %61 : vector<4xf32> to vector<1x1x4xf32>
    %63 = vector.broadcast %62 : vector<1x1x4xf32> to vector<16x16x4xf32>
    %64 = arith.mulf %59, %63 : vector<16x16x4xf32>
    %65 = arith.addf %57, %64 : vector<16x16x4xf32>
    %c0_32 = arith.constant 0 : index
    %c2_33 = arith.constant 2 : index
    %c2_34 = arith.constant 2 : index
    %c0_35 = arith.constant 0 : index
    %66 = vector.load %arg1[%c0_32, %c2_33, %c2_34, %c0_35] : memref<1x18x18x4xf32, #tpu.memory_space<vmem>>, vector<1x16x16x4xf32>
    %67 = vector.shape_cast %66 : vector<1x16x16x4xf32> to vector<16x16x4xf32>
    %68 = vector.extract_strided_slice %0 {offsets = [2, 2, 0], sizes = [1, 1, 4], strides = [1, 1, 1]} : vector<3x3x4xf32> to vector<1x1x4xf32>
    %69 = vector.shape_cast %68 : vector<1x1x4xf32> to vector<4xf32>
    %70 = vector.shape_cast %69 : vector<4xf32> to vector<1x1x4xf32>
    %71 = vector.broadcast %70 : vector<1x1x4xf32> to vector<16x16x4xf32>
    %72 = arith.mulf %67, %71 : vector<16x16x4xf32>
    %73 = arith.addf %65, %72 : vector<16x16x4xf32>
    %74 = vector.shape_cast %73 : vector<16x16x4xf32> to vector<256x4xf32>
    %c0_36 = arith.constant 0 : index
    %c0_37 = arith.constant 0 : index
    %75 = vector.load %arg3[%c0_36, %c0_37] : memref<4x4xf32, #tpu.memory_space<vmem>>, vector<4x4xf32>
    %cst_38 = arith.constant dense<0.000000e+00> : vector<256x4xf32>
    %76 = tpu.matmul %74, %75, %cst_38 {dimension_numbers = #tpu.dot_dimension_numbers<[1], [0], [0], [1], [0, 0, 1, 1], [], []>} : vector<256x4xf32>, vector<4x4xf32>, vector<256x4xf32> -> vector<256x4xf32>
    %c0_39 = arith.constant 0 : index
    %c0_40 = arith.constant 0 : index
    %77 = vector.load %arg4[%c0_39, %c0_40] : memref<1x4xf32, #tpu.memory_space<vmem>>, vector<1x4xf32>
    %78 = vector.broadcast %77 : vector<1x4xf32> to vector<256x4xf32>
    %79 = arith.addf %76, %78 : vector<256x4xf32>
    %80 = arith.negf %79 : vector<256x4xf32>
    %81 = math.exp %80 : vector<256x4xf32>
    %cst_41 = arith.constant 1.000000e+00 : f32
    %82 = vector.broadcast %cst_41 : f32 to vector<256x4xf32>
    %83 = arith.addf %82, %81 : vector<256x4xf32>
    %84 = arith.divf %82, %83 : vector<256x4xf32>
    %85 = arith.mulf %79, %84 : vector<256x4xf32>
    %c0_42 = arith.constant 0 : index
    %c0_43 = arith.constant 0 : index
    %c0_44 = arith.constant 0 : index
    %86 = vector.load %arg5[%c0_42, %c0_43, %c0_44] : memref<1x256x4xf32, #tpu.memory_space<vmem>>, vector<1x256x4xf32>
    %87 = vector.shape_cast %86 : vector<1x256x4xf32> to vector<256x4xf32>
    %88 = vector.shape_cast %85 : vector<256x4xf32> to vector<1x256x4xf32>
    tpu.vector_store %arg5[%c0_42, %c0_43, %c0_44], %88 {strides = array<i32>} : memref<1x256x4xf32, #tpu.memory_space<vmem>>, vector<1x256x4xf32>,
    return
  }
  func.func @transform_0(%arg0: i32) -> (i32, i32, i32, i32) {
    %c0_i32 = arith.constant 0 : i32
    %c0_i32_0 = arith.constant 0 : i32
    %c0_i32_1 = arith.constant 0 : i32
    %c0_i32_2 = arith.constant 0 : i32
    return %arg0, %c0_i32, %c0_i32_0, %c0_i32_1 : i32, i32, i32, i32
  }
  func.func @transform_1(%arg0: i32) -> (i32, i32, i32) {
    %c0_i32 = arith.constant 0 : i32
    %c0_i32_0 = arith.constant 0 : i32
    %c0_i32_1 = arith.constant 0 : i32
    %c0_i32_2 = arith.constant 0 : i32
    return %c0_i32, %c0_i32_0, %c0_i32_1 : i32, i32, i32
  }
  func.func @transform_2(%arg0: i32) -> (i32, i32) {
    %c0_i32 = arith.constant 0 : i32
    %c0_i32_0 = arith.constant 0 : i32
    %c0_i32_1 = arith.constant 0 : i32
    return %c0_i32, %c0_i32_0 : i32, i32
  }
  func.func @transform_3(%arg0: i32) -> (i32, i32) {
    %c0_i32 = arith.constant 0 : i32
    %c0_i32_0 = arith.constant 0 : i32
    %c0_i32_1 = arith.constant 0 : i32
    return %c0_i32, %c0_i32_0 : i32, i32
  }
  func.func @transform_4(%arg0: i32) -> (i32, i32, i32) {
    %c0_i32 = arith.constant 0 : i32
    %c0_i32_0 = arith.constant 0 : i32
    %c0_i32_1 = arith.constant 0 : i32
    return %arg0, %c0_i32, %c0_i32_0 : i32, i32, i32
  }
}

</mosaic_0001>

<llo_original>
// kernel: separable_conv2d_swish.1
$region0: #{separable_conv2d_swish.1}
  #allocation0 [shape = 'u32[]', space=smem, size = 0x4, offset = 0x4, fixed_abs, tag = 'smem constant byte address 0x4 - core index']
  #allocation1 [shape = 'u32[144,128]{1,0:T(1,128)}', space=vmem, size = 0x12000, scoped, tag = 'internal scratch']
  %s0 = inlined_call_operand.vmem [shape: f32[2,18,18,4], index: 0, kind: input, shape index: {}]
  %s1 = inlined_call_operand.vmem [shape: f32[3,3,4], index: 1, kind: input, shape index: {}]
  %s2 = inlined_call_operand.vmem [shape: f32[4,4], index: 2, kind: input, shape index: {}]
  %s3 = inlined_call_operand.vmem [shape: f32[1,4], index: 3, kind: input, shape index: {}]
  %s4 = inlined_call_operand.vmem [shape: f32[2,256,4], index: 4, kind: output, shape index: {}]
  %s5 = sld [smem:[#allocation0]]
  $region49: #{separable_conv2d_swish.1} parent=0
    _
  %s7 = ssub.s32 1, %s5
  %s8 = scalar_select 0, %s7, %s5
  loop: start=0, step=1, limit=4
  $region2: #{separable_conv2d_swish.1} parent=0 // loop_pre_header
    _
  $region3: #{separable_conv2d_swish.1} parent=0 // loop_header
    %s10 = sphi 0, %s14
    %p11 = scmp.ge.s32.totalorder %s10, 4
    %s20 = sphi 0, %s22
    %s23 = sphi 0, %s20
    %s24 = sphi 0, %s23
    %s40 = sphi 0, %s24
    %s44 = sphi 0, %s44
    %s46 = sphi 0, %s44
    %s47 = sphi 0, %s46
    %s61 = sphi 0, %s47
    %s65 = sphi 0, %s65
    %s67 = sphi 0, %s65
    %s68 = sphi 0, %s67
    %s82 = sphi 0, %s68
    %s86 = sphi 0, %s86
    %s88 = sphi 0, %s86
    %s89 = sphi 0, %s88
    %s103 = sphi 0, %s89
    %s109 = sphi 0, %s111
    %s112 = sphi 0, %s109
    %s113 = sphi 0, %s112
    %s129 = sphi 0, %s113
  $region4: #{separable_conv2d_swish.1} parent=0 // loop_header_branch
    %13 = sbr.rel (%p11) target = $region8
  $region5: #{separable_conv2d_swish.1} parent=0 // loop_body
    %s15 = ssub.s32 %s10, 1
    %s16 = ssub.s32 %s10, 2
    %s17 = sadd.s32 %s10, 1
    %s18 = ssub.s32 %s10, %s17
    %p19 = scmp.eq.s32.totalorder %s18, 0
    %s21 = sadd.s32 %s20, 1
    %s22 = scalar_select %p19, %s20, %s21
    %p25 = pneg %p19
    %p26 = scmp.eq.s32.totalorder %s10, 1
    %p27 = por %p25, %p26
    %p28 = scmp.ne.s32.totalorder %s20, %s23
    %p29 = scmp.eq.s32.totalorder %s10, 0
    %p30 = por %p28, %p29
    %p31 = scmp.ne.s32.totalorder %s20, %s23
    %p32 = scmp.eq.s32.totalorder %s15, 1
    %p33 = por %p31, %p32
    %p34 = scmp.ne.s32.totalorder %s23, %s24
    %p35 = scmp.eq.s32.totalorder %s15, 0
    %p36 = por %p34, %p35
    %p37 = scmp.ne.s32.totalorder %s23, %s24
    %p38 = scmp.eq.s32.totalorder %s16, 1
    %p39 = por %p37, %p38
    %p41 = scmp.ne.s32.totalorder %s24, %s40
    %p42 = scmp.eq.s32.totalorder %s16, 0
    %p43 = por %p41, %p42
    %s45 = sadd.s32 %s44, 1
    %p48 = scmp.eq.s32.totalorder %s10, 1
    %p49 = scmp.ne.s32.totalorder %s44, %s46
    %p50 = scmp.eq.s32.totalorder %s10, 0
    %p51 = por %p49, %p50
    %p52 = scmp.ne.s32.totalorder %s44, %s46
    %p53 = scmp.eq.s32.totalorder %s15, 1
    %p54 = por %p52, %p53
    %p55 = scmp.ne.s32.totalorder %s46, %s47
    %p56 = scmp.eq.s32.totalorder %s15, 0
    %p57 = por %p55, %p56
    %p58 = scmp.ne.s32.totalorder %s46, %s47
    %p59 = scmp.eq.s32.totalorder %s16, 1
    %p60 = por %p58, %p59
    %p62 = scmp.ne.s32.totalorder %s47, %s61
    %p63 = scmp.eq.s32.totalorder %s16, 0
    %p64 = por %p62, %p63
    %s66 = sadd.s32 %s65, 1
    %p69 = scmp.eq.s32.totalorder %s10, 1
    %p70 = scmp.ne.s32.totalorder %s65, %s67
    %p71 = scmp.eq.s32.totalorder %s10, 0
    %p72 = por %p70, %p71
    %p73 = scmp.ne.s32.totalorder %s65, %s67
    %p74 = scmp.eq.s32.totalorder %s15, 1
    %p75 = por %p73, %p74
    %p76 = scmp.ne.s32.totalorder %s67, %s68
    %p77 = scmp.eq.s32.totalorder %s15, 0
    %p78 = por %p76, %p77
    %p79 = scmp.ne.s32.totalorder %s67, %s68
    %p80 = scmp.eq.s32.totalorder %s16, 1
    %p81 = por %p79, %p80
    %p83 = scmp.ne.s32.totalorder %s68, %s82
    %p84 = scmp.eq.s32.totalorder %s16, 0
    %p85 = por %p83, %p84
    %s87 = sadd.s32 %s86, 1
    %p90 = scmp.eq.s32.totalorder %s10, 1
    %p91 = scmp.ne.s32.totalorder %s86, %s88
    %p92 = scmp.eq.s32.totalorder %s10, 0
    %p93 = por %p91, %p92
    %p94 = scmp.ne.s32.totalorder %s86, %s88
    %p95 = scmp.eq.s32.totalorder %s15, 1
    %p96 = por %p94, %p95
    %p97 = scmp.ne.s32.totalorder %s88, %s89
    %p98 = scmp.eq.s32.totalorder %s15, 0
    %p99 = por %p97, %p98
    %p100 = scmp.ne.s32.totalorder %s88, %s89
    %p101 = scmp.eq.s32.totalorder %s16, 1
    %p102 = por %p100, %p101
    %p104 = scmp.ne.s32.totalorder %s89, %s103
    %p105 = scmp.eq.s32.totalorder %s16, 0
    %p106 = por %p104, %p105
    %s107 = ssub.s32 %s10, %s17
    %p108 = scmp.eq.s32.totalorder %s107, 0
    %s110 = sadd.s32 %s109, 1
    %s111 = scalar_select %p108, %s109, %s110
    %p114 = pneg %p108
    %p115 = scmp.eq.s32.totalorder %s10, 1
    %p116 = por %p114, %p115
    %p117 = scmp.ne.s32.totalorder %s109, %s112
    %p118 = scmp.eq.s32.totalorder %s10, 0
    %p119 = por %p117, %p118
    %p120 = scmp.ne.s32.totalorder %s109, %s112
    %p121 = scmp.eq.s32.totalorder %s15, 1
    %p122 = por %p120, %p121
    %p123 = scmp.ne.s32.totalorder %s112, %s113
    %p124 = scmp.eq.s32.totalorder %s15, 0
    %p125 = por %p123, %p124
    %p126 = scmp.ne.s32.totalorder %s112, %s113
    %p127 = scmp.eq.s32.totalorder %s16, 1
    %p128 = por %p126, %p127
    %p130 = scmp.ne.s32.totalorder %s113, %s129
    %p131 = scmp.eq.s32.totalorder %s16, 0
    %p132 = por %p130, %p131
    %p133 = scmp.le.s32.totalorder 1, %s10
    %p134 = scmp.lt.s32.totalorder %s10, 3
    %p135 = pnand %p133, %p134
    %p136 = pneg %p135
    // Predicated region
    $region9: #{separable_conv2d_swish.1} parent=5 // pred_check
      _
    $region10: #{separable_conv2d_swish.1} parent=5 // pred_check_branch
      %138 = sbr.rel (%p135) target = $region12
    $region11: #{separable_conv2d_swish.1} parent=5 // pred_region
      %s139 = ssub.s32 %s10, 1
      // Predicated region
      $region13: #{separable_conv2d_swish.1} parent=11 // pred_check
        %p140 = pneg %p57
      $region14: #{separable_conv2d_swish.1} parent=11 // pred_check_branch
        %142 = sbr.rel (%p140) target = $region16
      $region15: #{separable_conv2d_swish.1} parent=11 // pred_region
        _
      $region16: #{separable_conv2d_swish.1} parent=11 // pred_fallthru
        _
      // Predicated region
      $region17: #{separable_conv2d_swish.1} parent=11 // pred_check
        %p143 = pneg %p78
      $region18: #{separable_conv2d_swish.1} parent=11 // pred_check_branch
        %145 = sbr.rel (%p143) target = $region20
      $region19: #{separable_conv2d_swish.1} parent=11 // pred_region
        _
      $region20: #{separable_conv2d_swish.1} parent=11 // pred_fallthru
        _
      // Predicated region
      $region21: #{separable_conv2d_swish.1} parent=11 // pred_check
        %p146 = pneg %p99
      $region22: #{separable_conv2d_swish.1} parent=11 // pred_check_branch
        %148 = sbr.rel (%p146) target = $region24
      $region23: #{separable_conv2d_swish.1} parent=11 // pred_region
        _
      $region24: #{separable_conv2d_swish.1} parent=11 // pred_fallthru
        _
    $region12: #{separable_conv2d_swish.1} parent=5 // pred_fallthru
      _
    %p149 = scmp.lt.s32.totalorder %s10, 2
    // Predicated region
    $region25: #{separable_conv2d_swish.1} parent=5 // pred_check
      %p150 = pneg %p149
    $region26: #{separable_conv2d_swish.1} parent=5 // pred_check_branch
      %152 = sbr.rel (%p150) target = $region28
    $region27: #{separable_conv2d_swish.1} parent=5 // pred_region
      // Predicated region
      $region29: #{separable_conv2d_swish.1} parent=27 // pred_check
        %p153 = pneg %p30
      $region30: #{separable_conv2d_swish.1} parent=27 // pred_check_branch
        %155 = sbr.rel (%p153) target = $region32
      $region31: #{separable_conv2d_swish.1} parent=27 // pred_region
        %p156 = scmp.lt.s32.totalorder %s10, 1
        %s157 = scalar_select %p156, %s10, 1
        %s158 = smul.addr %s157, 54
        %s159 = smul.addr %s158, 8
        %s160 = scalar_lea.vmem %s0, %s159
      $region32: #{separable_conv2d_swish.1} parent=27 // pred_fallthru
        _
    $region28: #{separable_conv2d_swish.1} parent=5 // pred_fallthru
      _
    %p161 = scmp.le.s32.totalorder 1, %s10
    %p162 = scmp.lt.s32.totalorder %s10, 3
    %p163 = pnand %p161, %p162
    %p164 = pneg %p163
    // Predicated region
    $region33: #{separable_conv2d_swish.1} parent=5 // pred_check
      _
    $region34: #{separable_conv2d_swish.1} parent=5 // pred_check_branch
      %166 = sbr.rel (%p163) target = $region36
    $region35: #{separable_conv2d_swish.1} parent=5 // pred_region
      %s167 = ssub.s32 %s10, 1
      %p168 = scmp.lt.s32.totalorder %s15, 1
      %s169 = scalar_select %p168, %s15, 1
      %s170 = smul.addr %s169, 54
      %s171 = smul.addr %s170, 8
      %s172 = scalar_lea.vmem %s0, %s171
      %p173 = pneg %p36
      %p174 = pneg %p33
      %p175 = pneg %p57
      %p176 = pneg %p54
      %p177 = pneg %p78
      %p178 = pneg %p75
      %p179 = pneg %p99
      %p180 = pneg %p96
      %p181 = pneg %p125
      %p182 = pneg %p122
      %p183 = scmp.lt.s32.totalorder %s15, 1
      %s184 = scalar_select %p183, %s15, 1
      %s185 = smul.addr %s184, 32
      %s186 = smul.addr %s185, 8
      %s187 = scalar_lea.vmem %s4, %s186
      %p188 = scmp.lt.s32.totalorder %s15, 1
      %s189 = scalar_select %p188, %s15, 1
      %s190 = smul.addr %s189, 54
      %s191 = smul.addr %s190, 8
      %s192 = scalar_lea.vmem %s0, %s191
      %p193 = scmp.lt.s32.totalorder %s15, 1
      %s194 = scalar_select %p193, %s15, 1
      %s195 = smul.addr %s194, 32
      %s196 = smul.addr %s195, 8
      %s197 = scalar_lea.vmem %s4, %s196
      %v198 = vld [vmem:[%s1] sm:$0x7]
      %v199 = vld [vmem:[%s1 + $0x4] sm:$0x7]
      %v200 = vld [vmem:[%s1 + $0x8] sm:$0x7]
      %v201 = vld [vmem:[%s192] sm:$0xff]
      %v202 = vld [vmem:[%s192 + $0x8] sm:$0xff]
      %v203 = vld [vmem:[%s192 + $0x18] sm:$0xff]
      %v204 = vld [vmem:[%s192 + $0x20] sm:$0xff]
      %v205 = vld [vmem:[%s192 + $0x30] sm:$0xff]
      %v206 = vld [vmem:[%s192 + $0x38] sm:$0xff]
      %v207 = vld [vmem:[%s192 + $0x48] sm:$0xff]
      %v208 = vld [vmem:[%s192 + $0x50] sm:$0xff]
      %v209 = vld [vmem:[%s192 + $0x60] sm:$0xff]
      %v210 = vld [vmem:[%s192 + $0x68] sm:$0xff]
      %v211 = vld [vmem:[%s192 + $0x78] sm:$0xff]
      %v212 = vld [vmem:[%s192 + $0x80] sm:$0xff]
      %v213 = vld [vmem:[%s192 + $0x90] sm:$0xff]
      %v214 = vld [vmem:[%s192 + $0x98] sm:$0xff]
      %v215 = vld [vmem:[%s192 + $0xa8] sm:$0xff]
      %v216 = vld [vmem:[%s192 + $0xb0] sm:$0xff]
      %v217 = vld [vmem:[%s192 + $0xc0] sm:$0xff]
      %v218 = vld [vmem:[%s192 + $0xc8] sm:$0xff]
      %v219 = vld [vmem:[%s192 + $0xd8] sm:$0xff]
      %v220 = vld [vmem:[%s192 + $0xe0] sm:$0xff]
      %v221 = vld [vmem:[%s192 + $0xf0] sm:$0xff]
      %v222 = vld [vmem:[%s192 + $0xf8] sm:$0xff]
      %v223 = vld [vmem:[%s192 + $0x108] sm:$0xff]
      %v224 = vld [vmem:[%s192 + $0x110] sm:$0xff]
      %v225 = vld [vmem:[%s192 + $0x120] sm:$0xff]
      %v226 = vld [vmem:[%s192 + $0x128] sm:$0xff]
      %v227 = vld [vmem:[%s192 + $0x138] sm:$0xff]
      %v228 = vld [vmem:[%s192 + $0x140] sm:$0xff]
      %v229 = vld [vmem:[%s192 + $0x150] sm:$0xff]
      %v230 = vld [vmem:[%s192 + $0x158] sm:$0xff]
      %v231 = vld [vmem:[%s192 + $0x168] sm:$0xff]
      %v232 = vld [vmem:[%s192 + $0x170] sm:$0xff]
      %v233 = vlaneseq
      %v234 = vshrl.u32 %v233, 7
      %v235 = vsub.s32 0, %v234
      %v236 = vrot.slane %v198, %v235
      %v237 = vmul.f32 %v201, %v236
      %v238 = vmul.f32 %v202, %v236
      %v239 = vmul.f32 %v203, %v236
      %v240 = vmul.f32 %v204, %v236
      %v241 = vmul.f32 %v205, %v236
      %v242 = vmul.f32 %v206, %v236
      %v243 = vmul.f32 %v207, %v236
      %v244 = vmul.f32 %v208, %v236
      %v245 = vmul.f32 %v209, %v236
      %v246 = vmul.f32 %v210, %v236
      %v247 = vmul.f32 %v211, %v236
      %v248 = vmul.f32 %v212, %v236
      %v249 = vmul.f32 %v213, %v236
      %v250 = vmul.f32 %v214, %v236
      %v251 = vmul.f32 %v215, %v236
      %v252 = vmul.f32 %v216, %v236
      %v253 = vmul.f32 %v217, %v236
      %v254 = vmul.f32 %v218, %v236
      %v255 = vmul.f32 %v219, %v236
      %v256 = vmul.f32 %v220, %v236
      %v257 = vmul.f32 %v221, %v236
      %v258 = vmul.f32 %v222, %v236
      %v259 = vmul.f32 %v223, %v236
      %v260 = vmul.f32 %v224, %v236
      %v261 = vmul.f32 %v225, %v236
      %v262 = vmul.f32 %v226, %v236
      %v263 = vmul.f32 %v227, %v236
      %v264 = vmul.f32 %v228, %v236
      %v265 = vmul.f32 %v229, %v236
      %v266 = vmul.f32 %v230, %v236
      %v267 = vmul.f32 %v231, %v236
      %v268 = vmul.f32 %v232, %v236
      %v269 = vadd.f32 %v237, 0.0
      %v270 = vadd.f32 %v238, 0.0
      %v271 = vadd.f32 %v239, 0.0
      %v272 = vadd.f32 %v240, 0.0
      %v273 = vadd.f32 %v241, 0.0
      %v274 = vadd.f32 %v242, 0.0
      %v275 = vadd.f32 %v243, 0.0
      %v276 = vadd.f32 %v244, 0.0
      %v277 = vadd.f32 %v245, 0.0
      %v278 = vadd.f32 %v246, 0.0
      %v279 = vadd.f32 %v247, 0.0
      %v280 = vadd.f32 %v248, 0.0
      %v281 = vadd.f32 %v249, 0.0
      %v282 = vadd.f32 %v250, 0.0
      %v283 = vadd.f32 %v251, 0.0
      %v284 = vadd.f32 %v252, 0.0
      %v285 = vadd.f32 %v253, 0.0
      %v286 = vadd.f32 %v254, 0.0
      %v287 = vadd.f32 %v255, 0.0
      %v288 = vadd.f32 %v256, 0.0
      %v289 = vadd.f32 %v257, 0.0
      %v290 = vadd.f32 %v258, 0.0
      %v291 = vadd.f32 %v259, 0.0
      %v292 = vadd.f32 %v260, 0.0
      %v293 = vadd.f32 %v261, 0.0
      %v294 = vadd.f32 %v262, 0.0
      %v295 = vadd.f32 %v263, 0.0
      %v296 = vadd.f32 %v264, 0.0
      %v297 = vadd.f32 %v265, 0.0
      %v298 = vadd.f32 %v266, 0.0
      %v299 = vadd.f32 %v267, 0.0
      %v300 = vadd.f32 %v268, 0.0
      %v301 = vld [vmem:[%s192 + $0x1] sm:$0xff]
      %v302 = vld [vmem:[%s192 + $0x9] sm:$0xff]
      %v303 = vld [vmem:[%s192 + $0x19] sm:$0xff]
      %v304 = vld [vmem:[%s192 + $0x21] sm:$0xff]
      %v305 = vld [vmem:[%s192 + $0x31] sm:$0xff]
      %v306 = vld [vmem:[%s192 + $0x39] sm:$0xff]
      %v307 = vld [vmem:[%s192 + $0x49] sm:$0xff]
      %v308 = vld [vmem:[%s192 + $0x51] sm:$0xff]
      %v309 = vld [vmem:[%s192 + $0x61] sm:$0xff]
      %v310 = vld [vmem:[%s192 + $0x69] sm:$0xff]
      %v311 = vld [vmem:[%s192 + $0x79] sm:$0xff]
      %v312 = vld [vmem:[%s192 + $0x81] sm:$0xff]
      %v313 = vld [vmem:[%s192 + $0x91] sm:$0xff]
      %v314 = vld [vmem:[%s192 + $0x99] sm:$0xff]
      %v315 = vld [vmem:[%s192 + $0xa9] sm:$0xff]
      %v316 = vld [vmem:[%s192 + $0xb1] sm:$0xff]
      %v317 = vld [vmem:[%s192 + $0xc1] sm:$0xff]
      %v318 = vld [vmem:[%s192 + $0xc9] sm:$0xff]
      %v319 = vld [vmem:[%s192 + $0xd9] sm:$0xff]
      %v320 = vld [vmem:[%s192 + $0xe1] sm:$0xff]
      %v321 = vld [vmem:[%s192 + $0xf1] sm:$0xff]
      %v322 = vld [vmem:[%s192 + $0xf9] sm:$0xff]
      %v323 = vld [vmem:[%s192 + $0x109] sm:$0xff]
      %v324 = vld [vmem:[%s192 + $0x111] sm:$0xff]
      %v325 = vld [vmem:[%s192 + $0x121] sm:$0xff]
      %v326 = vld [vmem:[%s192 + $0x129] sm:$0xff]
      %v327 = vld [vmem:[%s192 + $0x139] sm:$0xff]
      %v328 = vld [vmem:[%s192 + $0x141] sm:$0xff]
      %v329 = vld [vmem:[%s192 + $0x151] sm:$0xff]
      %v330 = vld [vmem:[%s192 + $0x159] sm:$0xff]
      %v331 = vld [vmem:[%s192 + $0x169] sm:$0xff]
      %v332 = vld [vmem:[%s192 + $0x171] sm:$0xff]
      %v333 = vlaneseq
      %v334 = vshrl.u32 %v333, 7
      %v335 = vsub.s32 1, %v334
      %v336 = vrot.slane %v198, %v335
      %v337 = vmul.f32 %v301, %v336
      %v338 = vmul.f32 %v302, %v336
      %v339 = vmul.f32 %v303, %v336
      %v340 = vmul.f32 %v304, %v336
      %v341 = vmul.f32 %v305, %v336
      %v342 = vmul.f32 %v306, %v336
      %v343 = vmul.f32 %v307, %v336
      %v344 = vmul.f32 %v308, %v336
      %v345 = vmul.f32 %v309, %v336
      %v346 = vmul.f32 %v310, %v336
      %v347 = vmul.f32 %v311, %v336
      %v348 = vmul.f32 %v312, %v336
      %v349 = vmul.f32 %v313, %v336
      %v350 = vmul.f32 %v314, %v336
      %v351 = vmul.f32 %v315, %v336
      %v352 = vmul.f32 %v316, %v336
      %v353 = vmul.f32 %v317, %v336
      %v354 = vmul.f32 %v318, %v336
      %v355 = vmul.f32 %v319, %v336
      %v356 = vmul.f32 %v320, %v336
      %v357 = vmul.f32 %v321, %v336
      %v358 = vmul.f32 %v322, %v336
      %v359 = vmul.f32 %v323, %v336
      %v360 = vmul.f32 %v324, %v336
      %v361 = vmul.f32 %v325, %v336
      %v362 = vmul.f32 %v326, %v336
      %v363 = vmul.f32 %v327, %v336
      %v364 = vmul.f32 %v328, %v336
      %v365 = vmul.f32 %v329, %v336
      %v366 = vmul.f32 %v330, %v336
      %v367 = vmul.f32 %v331, %v336
      %v368 = vmul.f32 %v332, %v336
      %v369 = vadd.f32 %v269, %v337
      %v370 = vadd.f32 %v270, %v338
      %v371 = vadd.f32 %v271, %v339
      %v372 = vadd.f32 %v272, %v340
      %v373 = vadd.f32 %v273, %v341
      %v374 = vadd.f32 %v274, %v342
      %v375 = vadd.f32 %v275, %v343
      %v376 = vadd.f32 %v276, %v344
      %v377 = vadd.f32 %v277, %v345
      %v378 = vadd.f32 %v278, %v346
      %v379 = vadd.f32 %v279, %v347
      %v380 = vadd.f32 %v280, %v348
      %v381 = vadd.f32 %v281, %v349
      %v382 = vadd.f32 %v282, %v350
      %v383 = vadd.f32 %v283, %v351
      %v384 = vadd.f32 %v284, %v352
      %v385 = vadd.f32 %v285, %v353
      %v386 = vadd.f32 %v286, %v354
      %v387 = vadd.f32 %v287, %v355
      %v388 = vadd.f32 %v288, %v356
      %v389 = vadd.f32 %v289, %v357
      %v390 = vadd.f32 %v290, %v358
      %v391 = vadd.f32 %v291, %v359
      %v392 = vadd.f32 %v292, %v360
      %v393 = vadd.f32 %v293, %v361
      %v394 = vadd.f32 %v294, %v362
      %v395 = vadd.f32 %v295, %v363
      %v396 = vadd.f32 %v296, %v364
      %v397 = vadd.f32 %v297, %v365
      %v398 = vadd.f32 %v298, %v366
      %v399 = vadd.f32 %v299, %v367
      %v400 = vadd.f32 %v300, %v368
      %v401 = vld [vmem:[%s192 + $0x2] sm:$0xff]
      %v402 = vld [vmem:[%s192 + $0xa] sm:$0xff]
      %v403 = vld [vmem:[%s192 + $0x1a] sm:$0xff]
      %v404 = vld [vmem:[%s192 + $0x22] sm:$0xff]
      %v405 = vld [vmem:[%s192 + $0x32] sm:$0xff]
      %v406 = vld [vmem:[%s192 + $0x3a] sm:$0xff]
      %v407 = vld [vmem:[%s192 + $0x4a] sm:$0xff]
      %v408 = vld [vmem:[%s192 + $0x52] sm:$0xff]
      %v409 = vld [vmem:[%s192 + $0x62] sm:$0xff]
      %v410 = vld [vmem:[%s192 + $0x6a] sm:$0xff]
      %v411 = vld [vmem:[%s192 + $0x7a] sm:$0xff]
      %v412 = vld [vmem:[%s192 + $0x82] sm:$0xff]
      %v413 = vld [vmem:[%s192 + $0x92] sm:$0xff]
      %v414 = vld [vmem:[%s192 + $0x9a] sm:$0xff]
      %v415 = vld [vmem:[%s192 + $0xaa] sm:$0xff]
      %v416 = vld [vmem:[%s192 + $0xb2] sm:$0xff]
      %v417 = vld [vmem:[%s192 + $0xc2] sm:$0xff]
      %v418 = vld [vmem:[%s192 + $0xca] sm:$0xff]
      %v419 = vld [vmem:[%s192 + $0xda] sm:$0xff]
      %v420 = vld [vmem:[%s192 + $0xe2] sm:$0xff]
      %v421 = vld [vmem:[%s192 + $0xf2] sm:$0xff]
      %v422 = vld [vmem:[%s192 + $0xfa] sm:$0xff]
      %v423 = vld [vmem:[%s192 + $0x10a] sm:$0xff]
      %v424 = vld [vmem:[%s192 + $0x112] sm:$0xff]
      %v425 = vld [vmem:[%s192 + $0x122] sm:$0xff]
      %v426 = vld [vmem:[%s192 + $0x12a] sm:$0xff]
      %v427 = vld [vmem:[%s192 + $0x13a] sm:$0xff]
      %v428 = vld [vmem:[%s192 + $0x142] sm:$0xff]
      %v429 = vld [vmem:[%s192 + $0x152] sm:$0xff]
      %v430 = vld [vmem:[%s192 + $0x15a] sm:$0xff]
      %v431 = vld [vmem:[%s192 + $0x16a] sm:$0xff]
      %v432 = vld [vmem:[%s192 + $0x172] sm:$0xff]
      %v433 = vlaneseq
      %v434 = vshrl.u32 %v433, 7
      %v435 = vsub.s32 2, %v434
      %v436 = vrot.slane %v198, %v435
      %v437 = vmul.f32 %v401, %v436
      %v438 = vmul.f32 %v402, %v436
      %v439 = vmul.f32 %v403, %v436
      %v440 = vmul.f32 %v404, %v436
      %v441 = vmul.f32 %v405, %v436
      %v442 = vmul.f32 %v406, %v436
      %v443 = vmul.f32 %v407, %v436
      %v444 = vmul.f32 %v408, %v436
      %v445 = vmul.f32 %v409, %v436
      %v446 = vmul.f32 %v410, %v436
      %v447 = vmul.f32 %v411, %v436
      %v448 = vmul.f32 %v412, %v436
      %v449 = vmul.f32 %v413, %v436
      %v450 = vmul.f32 %v414, %v436
      %v451 = vmul.f32 %v415, %v436
      %v452 = vmul.f32 %v416, %v436
      %v453 = vmul.f32 %v417, %v436
      %v454 = vmul.f32 %v418, %v436
      %v455 = vmul.f32 %v419, %v436
      %v456 = vmul.f32 %v420, %v436
      %v457 = vmul.f32 %v421, %v436
      %v458 = vmul.f32 %v422, %v436
      %v459 = vmul.f32 %v423, %v436
      %v460 = vmul.f32 %v424, %v436
      %v461 = vmul.f32 %v425, %v436
      %v462 = vmul.f32 %v426, %v436
      %v463 = vmul.f32 %v427, %v436
      %v464 = vmul.f32 %v428, %v436
      %v465 = vmul.f32 %v429, %v436
      %v466 = vmul.f32 %v430, %v436
      %v467 = vmul.f32 %v431, %v436
      %v468 = vmul.f32 %v432, %v436
      %v469 = vadd.f32 %v369, %v437
      %v470 = vadd.f32 %v370, %v438
      %v471 = vadd.f32 %v371, %v439
      %v472 = vadd.f32 %v372, %v440
      %v473 = vadd.f32 %v373, %v441
      %v474 = vadd.f32 %v374, %v442
      %v475 = vadd.f32 %v375, %v443
      %v476 = vadd.f32 %v376, %v444
      %v477 = vadd.f32 %v377, %v445
      %v478 = vadd.f32 %v378, %v446
      %v479 = vadd.f32 %v379, %v447
      %v480 = vadd.f32 %v380, %v448
      %v481 = vadd.f32 %v381, %v449
      %v482 = vadd.f32 %v382, %v450
      %v483 = vadd.f32 %v383, %v451
      %v484 = vadd.f32 %v384, %v452
      %v485 = vadd.f32 %v385, %v453
      %v486 = vadd.f32 %v386, %v454
      %v487 = vadd.f32 %v387, %v455
      %v488 = vadd.f32 %v388, %v456
      %v489 = vadd.f32 %v389, %v457
      %v490 = vadd.f32 %v390, %v458
      %v491 = vadd.f32 %v391, %v459
      %v492 = vadd.f32 %v392, %v460
      %v493 = vadd.f32 %v393, %v461
      %v494 = vadd.f32 %v394, %v462
      %v495 = vadd.f32 %v395, %v463
      %v496 = vadd.f32 %v396, %v464
      %v497 = vadd.f32 %v397, %v465
      %v498 = vadd.f32 %v398, %v466
      %v499 = vadd.f32 %v399, %v467
      %v500 = vadd.f32 %v400, %v468
      %s501 = scalar_lea.vmem %s192, 24
      %v502 = vld [vmem:[%s501] sm:$0xff]
      %v503 = vld [vmem:[%s501 + $0x8] sm:$0xff]
      %v504 = vld [vmem:[%s501 + $0x18] sm:$0xff]
      %v505 = vld [vmem:[%s501 + $0x20] sm:$0xff]
      %v506 = vld [vmem:[%s501 + $0x30] sm:$0xff]
      %v507 = vld [vmem:[%s501 + $0x38] sm:$0xff]
      %v508 = vld [vmem:[%s501 + $0x48] sm:$0xff]
      %v509 = vld [vmem:[%s501 + $0x50] sm:$0xff]
      %v510 = vld [vmem:[%s501 + $0x60] sm:$0xff]
      %v511 = vld [vmem:[%s501 + $0x68] sm:$0xff]
      %v512 = vld [vmem:[%s501 + $0x78] sm:$0xff]
      %v513 = vld [vmem:[%s501 + $0x80] sm:$0xff]
      %v514 = vld [vmem:[%s501 + $0x90] sm:$0xff]
      %v515 = vld [vmem:[%s501 + $0x98] sm:$0xff]
      %v516 = vld [vmem:[%s501 + $0xa8] sm:$0xff]
      %v517 = vld [vmem:[%s501 + $0xb0] sm:$0xff]
      %v518 = vld [vmem:[%s501 + $0xc0] sm:$0xff]
      %v519 = vld [vmem:[%s501 + $0xc8] sm:$0xff]
      %v520 = vld [vmem:[%s501 + $0xd8] sm:$0xff]
      %v521 = vld [vmem:[%s501 + $0xe0] sm:$0xff]
      %v522 = vld [vmem:[%s501 + $0xf0] sm:$0xff]
      %v523 = vld [vmem:[%s501 + $0xf8] sm:$0xff]
      %v524 = vld [vmem:[%s501 + $0x108] sm:$0xff]
      %v525 = vld [vmem:[%s501 + $0x110] sm:$0xff]
      %v526 = vld [vmem:[%s501 + $0x120] sm:$0xff]
      %v527 = vld [vmem:[%s501 + $0x128] sm:$0xff]
      %v528 = vld [vmem:[%s501 + $0x138] sm:$0xff]
      %v529 = vld [vmem:[%s501 + $0x140] sm:$0xff]
      %v530 = vld [vmem:[%s501 + $0x150] sm:$0xff]
      %v531 = vld [vmem:[%s501 + $0x158] sm:$0xff]
      %v532 = vld [vmem:[%s501 + $0x168] sm:$0xff]
      %v533 = vld [vmem:[%s501 + $0x170] sm:$0xff]
      %v534 = vlaneseq
      %v535 = vshrl.u32 %v534, 7
      %v536 = vsub.s32 0, %v535
      %v537 = vrot.slane %v199, %v536
      %v538 = vmul.f32 %v502, %v537
      %v539 = vmul.f32 %v503, %v537
      %v540 = vmul.f32 %v504, %v537
      %v541 = vmul.f32 %v505, %v537
      %v542 = vmul.f32 %v506, %v537
      %v543 = vmul.f32 %v507, %v537
      %v544 = vmul.f32 %v508, %v537
      %v545 = vmul.f32 %v509, %v537
      %v546 = vmul.f32 %v510, %v537
      %v547 = vmul.f32 %v511, %v537
      %v548 = vmul.f32 %v512, %v537
      %v549 = vmul.f32 %v513, %v537
      %v550 = vmul.f32 %v514, %v537
      %v551 = vmul.f32 %v515, %v537
      %v552 = vmul.f32 %v516, %v537
      %v553 = vmul.f32 %v517, %v537
      %v554 = vmul.f32 %v518, %v537
      %v555 = vmul.f32 %v519, %v537
      %v556 = vmul.f32 %v520, %v537
      %v557 = vmul.f32 %v521, %v537
      %v558 = vmul.f32 %v522, %v537
      %v559 = vmul.f32 %v523, %v537
      %v560 = vmul.f32 %v524, %v537
      %v561 = vmul.f32 %v525, %v537
      %v562 = vmul.f32 %v526, %v537
      %v563 = vmul.f32 %v527, %v537
      %v564 = vmul.f32 %v528, %v537
      %v565 = vmul.f32 %v529, %v537
      %v566 = vmul.f32 %v530, %v537
      %v567 = vmul.f32 %v531, %v537
      %v568 = vmul.f32 %v532, %v537
      %v569 = vmul.f32 %v533, %v537
      %v570 = vadd.f32 %v469, %v538
      %v571 = vadd.f32 %v470, %v539
      %v572 = vadd.f32 %v471, %v540
      %v573 = vadd.f32 %v472, %v541
      %v574 = vadd.f32 %v473, %v542
      %v575 = vadd.f32 %v474, %v543
      %v576 = vadd.f32 %v475, %v544
      %v577 = vadd.f32 %v476, %v545
      %v578 = vadd.f32 %v477, %v546
      %v579 = vadd.f32 %v478, %v547
      %v580 = vadd.f32 %v479, %v548
      %v581 = vadd.f32 %v480, %v549
      %v582 = vadd.f32 %v481, %v550
      %v583 = vadd.f32 %v482, %v551
      %v584 = vadd.f32 %v483, %v552
      %v585 = vadd.f32 %v484, %v553
      %v586 = vadd.f32 %v485, %v554
      %v587 = vadd.f32 %v486, %v555
      %v588 = vadd.f32 %v487, %v556
      %v589 = vadd.f32 %v488, %v557
      %v590 = vadd.f32 %v489, %v558
      %v591 = vadd.f32 %v490, %v559
      %v592 = vadd.f32 %v491, %v560
      %v593 = vadd.f32 %v492, %v561
      %v594 = vadd.f32 %v493, %v562
      %v595 = vadd.f32 %v494, %v563
      %v596 = vadd.f32 %v495, %v564
      %v597 = vadd.f32 %v496, %v565
      %v598 = vadd.f32 %v497, %v566
      %v599 = vadd.f32 %v498, %v567
      %v600 = vadd.f32 %v499, %v568
      %v601 = vadd.f32 %v500, %v569
      %v602 = vld [vmem:[%s501 + $0x1] sm:$0xff]
      %v603 = vld [vmem:[%s501 + $0x9] sm:$0xff]
      %v604 = vld [vmem:[%s501 + $0x19] sm:$0xff]
      %v605 = vld [vmem:[%s501 + $0x21] sm:$0xff]
      %v606 = vld [vmem:[%s501 + $0x31] sm:$0xff]
      %v607 = vld [vmem:[%s501 + $0x39] sm:$0xff]
      %v608 = vld [vmem:[%s501 + $0x49] sm:$0xff]
      %v609 = vld [vmem:[%s501 + $0x51] sm:$0xff]
      %v610 = vld [vmem:[%s501 + $0x61] sm:$0xff]
      %v611 = vld [vmem:[%s501 + $0x69] sm:$0xff]
      %v612 = vld [vmem:[%s501 + $0x79] sm:$0xff]
      %v613 = vld [vmem:[%s501 + $0x81] sm:$0xff]
      %v614 = vld [vmem:[%s501 + $0x91] sm:$0xff]
      %v615 = vld [vmem:[%s501 + $0x99] sm:$0xff]
      %v616 = vld [vmem:[%s501 + $0xa9] sm:$0xff]
      %v617 = vld [vmem:[%s501 + $0xb1] sm:$0xff]
      %v618 = vld [vmem:[%s501 + $0xc1] sm:$0xff]
      %v619 = vld [vmem:[%s501 + $0xc9] sm:$0xff]
      %v620 = vld [vmem:[%s501 + $0xd9] sm:$0xff]
      %v621 = vld [vmem:[%s501 + $0xe1] sm:$0xff]
      %v622 = vld [vmem:[%s501 + $0xf1] sm:$0xff]
      %v623 = vld [vmem:[%s501 + $0xf9] sm:$0xff]
      %v624 = vld [vmem:[%s501 + $0x109] sm:$0xff]
      %v625 = vld [vmem:[%s501 + $0x111] sm:$0xff]
      %v626 = vld [vmem:[%s501 + $0x121] sm:$0xff]
      %v627 = vld [vmem:[%s501 + $0x129] sm:$0xff]
      %v628 = vld [vmem:[%s501 + $0x139] sm:$0xff]
      %v629 = vld [vmem:[%s501 + $0x141] sm:$0xff]
      %v630 = vld [vmem:[%s501 + $0x151] sm:$0xff]
      %v631 = vld [vmem:[%s501 + $0x159] sm:$0xff]
      %v632 = vld [vmem:[%s501 + $0x169] sm:$0xff]
      %v633 = vld [vmem:[%s501 + $0x171] sm:$0xff]
      %v634 = vlaneseq
      %v635 = vshrl.u32 %v634, 7
      %v636 = vsub.s32 1, %v635
      %v637 = vrot.slane %v199, %v636
      %v638 = vmul.f32 %v602, %v637
      %v639 = vmul.f32 %v603, %v637
      %v640 = vmul.f32 %v604, %v637
      %v641 = vmul.f32 %v605, %v637
      %v642 = vmul.f32 %v606, %v637
      %v643 = vmul.f32 %v607, %v637
      %v644 = vmul.f32 %v608, %v637
      %v645 = vmul.f32 %v609, %v637
      %v646 = vmul.f32 %v610, %v637
      %v647 = vmul.f32 %v611, %v637
      %v648 = vmul.f32 %v612, %v637
      %v649 = vmul.f32 %v613, %v637
      %v650 = vmul.f32 %v614, %v637
      %v651 = vmul.f32 %v615, %v637
      %v652 = vmul.f32 %v616, %v637
      %v653 = vmul.f32 %v617, %v637
      %v654 = vmul.f32 %v618, %v637
      %v655 = vmul.f32 %v619, %v637
      %v656 = vmul.f32 %v620, %v637
      %v657 = vmul.f32 %v621, %v637
      %v658 = vmul.f32 %v622, %v637
      %v659 = vmul.f32 %v623, %v637
      %v660 = vmul.f32 %v624, %v637
      %v661 = vmul.f32 %v625, %v637
      %v662 = vmul.f32 %v626, %v637
      %v663 = vmul.f32 %v627, %v637
      %v664 = vmul.f32 %v628, %v637
      %v665 = vmul.f32 %v629, %v637
      %v666 = vmul.f32 %v630, %v637
      %v667 = vmul.f32 %v631, %v637
      %v668 = vmul.f32 %v632, %v637
      %v669 = vmul.f32 %v633, %v637
      %v670 = vadd.f32 %v570, %v638
      %v671 = vadd.f32 %v571, %v639
      %v672 = vadd.f32 %v572, %v640
      %v673 = vadd.f32 %v573, %v641
      %v674 = vadd.f32 %v574, %v642
      %v675 = vadd.f32 %v575, %v643
      %v676 = vadd.f32 %v576, %v644
      %v677 = vadd.f32 %v577, %v645
      %v678 = vadd.f32 %v578, %v646
      %v679 = vadd.f32 %v579, %v647
      %v680 = vadd.f32 %v580, %v648
      %v681 = vadd.f32 %v581, %v649
      %v682 = vadd.f32 %v582, %v650
      %v683 = vadd.f32 %v583, %v651
      %v684 = vadd.f32 %v584, %v652
      %v685 = vadd.f32 %v585, %v653
      %v686 = vadd.f32 %v586, %v654
      %v687 = vadd.f32 %v587, %v655
      %v688 = vadd.f32 %v588, %v656
      %v689 = vadd.f32 %v589, %v657
      %v690 = vadd.f32 %v590, %v658
      %v691 = vadd.f32 %v591, %v659
      %v692 = vadd.f32 %v592, %v660
      %v693 = vadd.f32 %v593, %v661
      %v694 = vadd.f32 %v594, %v662
      %v695 = vadd.f32 %v595, %v663
      %v696 = vadd.f32 %v596, %v664
      %v697 = vadd.f32 %v597, %v665
      %v698 = vadd.f32 %v598, %v666
      %v699 = vadd.f32 %v599, %v667
      %v700 = vadd.f32 %v600, %v668
      %v701 = vadd.f32 %v601, %v669
      %v702 = vld [vmem:[%s501 + $0x2] sm:$0xff]
      %v703 = vld [vmem:[%s501 + $0xa] sm:$0xff]
      %v704 = vld [vmem:[%s501 + $0x1a] sm:$0xff]
      %v705 = vld [vmem:[%s501 + $0x22] sm:$0xff]
      %v706 = vld [vmem:[%s501 + $0x32] sm:$0xff]
      %v707 = vld [vmem:[%s501 + $0x3a] sm:$0xff]
      %v708 = vld [vmem:[%s501 + $0x4a] sm:$0xff]
      %v709 = vld [vmem:[%s501 + $0x52] sm:$0xff]
      %v710 = vld [vmem:[%s501 + $0x62] sm:$0xff]
      %v711 = vld [vmem:[%s501 + $0x6a] sm:$0xff]
      %v712 = vld [vmem:[%s501 + $0x7a] sm:$0xff]
      %v713 = vld [vmem:[%s501 + $0x82] sm:$0xff]
      %v714 = vld [vmem:[%s501 + $0x92] sm:$0xff]
      %v715 = vld [vmem:[%s501 + $0x9a] sm:$0xff]
      %v716 = vld [vmem:[%s501 + $0xaa] sm:$0xff]
      %v717 = vld [vmem:[%s501 + $0xb2] sm:$0xff]
      %v718 = vld [vmem:[%s501 + $0xc2] sm:$0xff]
      %v719 = vld [vmem:[%s501 + $0xca] sm:$0xff]
      %v720 = vld [vmem:[%s501 + $0xda] sm:$0xff]
      %v721 = vld [vmem:[%s501 + $0xe2] sm:$0xff]
      %v722 = vld [vmem:[%s501 + $0xf2] sm:$0xff]
      %v723 = vld [vmem:[%s501 + $0xfa] sm:$0xff]
      %v724 = vld [vmem:[%s501 + $0x10a] sm:$0xff]
      %v725 = vld [vmem:[%s501 + $0x112] sm:$0xff]
      %v726 = vld [vmem:[%s501 + $0x122] sm:$0xff]
      %v727 = vld [vmem:[%s501 + $0x12a] sm:$0xff]
      %v728 = vld [vmem:[%s501 + $0x13a] sm:$0xff]
      %v729 = vld [vmem:[%s501 + $0x142] sm:$0xff]
      %v730 = vld [vmem:[%s501 + $0x152] sm:$0xff]
      %v731 = vld [vmem:[%s501 + $0x15a] sm:$0xff]
      %v732 = vld [vmem:[%s501 + $0x16a] sm:$0xff]
      %v733 = vld [vmem:[%s501 + $0x172] sm:$0xff]
      %v734 = vlaneseq
      %v735 = vshrl.u32 %v734, 7
      %v736 = vsub.s32 2, %v735
      %v737 = vrot.slane %v199, %v736
      %v738 = vmul.f32 %v702, %v737
      %v739 = vmul.f32 %v703, %v737
      %v740 = vmul.f32 %v704, %v737
      %v741 = vmul.f32 %v705, %v737
      %v742 = vmul.f32 %v706, %v737
      %v743 = vmul.f32 %v707, %v737
      %v744 = vmul.f32 %v708, %v737
      %v745 = vmul.f32 %v709, %v737
      %v746 = vmul.f32 %v710, %v737
      %v747 = vmul.f32 %v711, %v737
      %v748 = vmul.f32 %v712, %v737
      %v749 = vmul.f32 %v713, %v737
      %v750 = vmul.f32 %v714, %v737
      %v751 = vmul.f32 %v715, %v737
      %v752 = vmul.f32 %v716, %v737
      %v753 = vmul.f32 %v717, %v737
      %v754 = vmul.f32 %v718, %v737
      %v755 = vmul.f32 %v719, %v737
      %v756 = vmul.f32 %v720, %v737
      %v757 = vmul.f32 %v721, %v737
      %v758 = vmul.f32 %v722, %v737
      %v759 = vmul.f32 %v723, %v737
      %v760 = vmul.f32 %v724, %v737
      %v761 = vmul.f32 %v725, %v737
      %v762 = vmul.f32 %v726, %v737
      %v763 = vmul.f32 %v727, %v737
      %v764 = vmul.f32 %v728, %v737
      %v765 = vmul.f32 %v729, %v737
      %v766 = vmul.f32 %v730, %v737
      %v767 = vmul.f32 %v731, %v737
      %v768 = vmul.f32 %v732, %v737
      %v769 = vmul.f32 %v733, %v737
      %v770 = vadd.f32 %v670, %v738
      %v771 = vadd.f32 %v671, %v739
      %v772 = vadd.f32 %v672, %v740
      %v773 = vadd.f32 %v673, %v741
      %v774 = vadd.f32 %v674, %v742
      %v775 = vadd.f32 %v675, %v743
      %v776 = vadd.f32 %v676, %v744
      %v777 = vadd.f32 %v677, %v745
      %v778 = vadd.f32 %v678, %v746
      %v779 = vadd.f32 %v679, %v747
      %v780 = vadd.f32 %v680, %v748
      %v781 = vadd.f32 %v681, %v749
      %v782 = vadd.f32 %v682, %v750
      %v783 = vadd.f32 %v683, %v751
      %v784 = vadd.f32 %v684, %v752
      %v785 = vadd.f32 %v685, %v753
      %v786 = vadd.f32 %v686, %v754
      %v787 = vadd.f32 %v687, %v755
      %v788 = vadd.f32 %v688, %v756
      %v789 = vadd.f32 %v689, %v757
      %v790 = vadd.f32 %v690, %v758
      %v791 = vadd.f32 %v691, %v759
      %v792 = vadd.f32 %v692, %v760
      %v793 = vadd.f32 %v693, %v761
      %v794 = vadd.f32 %v694, %v762
      %v795 = vadd.f32 %v695, %v763
      %v796 = vadd.f32 %v696, %v764
      %v797 = vadd.f32 %v697, %v765
      %v798 = vadd.f32 %v698, %v766
      %v799 = vadd.f32 %v699, %v767
      %v800 = vadd.f32 %v700, %v768
      %v801 = vadd.f32 %v701, %v769
      %s802 = scalar_lea.vmem %s192, 48
      %v803 = vld [vmem:[%s802] sm:$0xff]
      %v804 = vld [vmem:[%s802 + $0x8] sm:$0xff]
      %v805 = vld [vmem:[%s802 + $0x18] sm:$0xff]
      %v806 = vld [vmem:[%s802 + $0x20] sm:$0xff]
      %v807 = vld [vmem:[%s802 + $0x30] sm:$0xff]
      %v808 = vld [vmem:[%s802 + $0x38] sm:$0xff]
      %v809 = vld [vmem:[%s802 + $0x48] sm:$0xff]
      %v810 = vld [vmem:[%s802 + $0x50] sm:$0xff]
      %v811 = vld [vmem:[%s802 + $0x60] sm:$0xff]
      %v812 = vld [vmem:[%s802 + $0x68] sm:$0xff]
      %v813 = vld [vmem:[%s802 + $0x78] sm:$0xff]
      %v814 = vld [vmem:[%s802 + $0x80] sm:$0xff]
      %v815 = vld [vmem:[%s802 + $0x90] sm:$0xff]
      %v816 = vld [vmem:[%s802 + $0x98] sm:$0xff]
      %v817 = vld [vmem:[%s802 + $0xa8] sm:$0xff]
      %v818 = vld [vmem:[%s802 + $0xb0] sm:$0xff]
      %v819 = vld [vmem:[%s802 + $0xc0] sm:$0xff]
      %v820 = vld [vmem:[%s802 + $0xc8] sm:$0xff]
      %v821 = vld [vmem:[%s802 + $0xd8] sm:$0xff]
      %v822 = vld [vmem:[%s802 + $0xe0] sm:$0xff]
      %v823 = vld [vmem:[%s802 + $0xf0] sm:$0xff]
      %v824 = vld [vmem:[%s802 + $0xf8] sm:$0xff]
      %v825 = vld [vmem:[%s802 + $0x108] sm:$0xff]
      %v826 = vld [vmem:[%s802 + $0x110] sm:$0xff]
      %v827 = vld [vmem:[%s802 + $0x120] sm:$0xff]
      %v828 = vld [vmem:[%s802 + $0x128] sm:$0xff]
      %v829 = vld [vmem:[%s802 + $0x138] sm:$0xff]
      %v830 = vld [vmem:[%s802 + $0x140] sm:$0xff]
      %v831 = vld [vmem:[%s802 + $0x150] sm:$0xff]
      %v832 = vld [vmem:[%s802 + $0x158] sm:$0xff]
      %v833 = vld [vmem:[%s802 + $0x168] sm:$0xff]
      %v834 = vld [vmem:[%s802 + $0x170] sm:$0xff]
      %v835 = vlaneseq
      %v836 = vshrl.u32 %v835, 7
      %v837 = vsub.s32 0, %v836
      %v838 = vrot.slane %v200, %v837
      %v839 = vmul.f32 %v803, %v838
      %v840 = vmul.f32 %v804, %v838
      %v841 = vmul.f32 %v805, %v838
      %v842 = vmul.f32 %v806, %v838
      %v843 = vmul.f32 %v807, %v838
      %v844 = vmul.f32 %v808, %v838
      %v845 = vmul.f32 %v809, %v838
      %v846 = vmul.f32 %v810, %v838
      %v847 = vmul.f32 %v811, %v838
      %v848 = vmul.f32 %v812, %v838
      %v849 = vmul.f32 %v813, %v838
      %v850 = vmul.f32 %v814, %v838
      %v851 = vmul.f32 %v815, %v838
      %v852 = vmul.f32 %v816, %v838
      %v853 = vmul.f32 %v817, %v838
      %v854 = vmul.f32 %v818, %v838
      %v855 = vmul.f32 %v819, %v838
      %v856 = vmul.f32 %v820, %v838
      %v857 = vmul.f32 %v821, %v838
      %v858 = vmul.f32 %v822, %v838
      %v859 = vmul.f32 %v823, %v838
      %v860 = vmul.f32 %v824, %v838
      %v861 = vmul.f32 %v825, %v838
      %v862 = vmul.f32 %v826, %v838
      %v863 = vmul.f32 %v827, %v838
      %v864 = vmul.f32 %v828, %v838
      %v865 = vmul.f32 %v829, %v838
      %v866 = vmul.f32 %v830, %v838
      %v867 = vmul.f32 %v831, %v838
      %v868 = vmul.f32 %v832, %v838
      %v869 = vmul.f32 %v833, %v838
      %v870 = vmul.f32 %v834, %v838
      %v871 = vadd.f32 %v770, %v839
      %v872 = vadd.f32 %v771, %v840
      %v873 = vadd.f32 %v772, %v841
      %v874 = vadd.f32 %v773, %v842
      %v875 = vadd.f32 %v774, %v843
      %v876 = vadd.f32 %v775, %v844
      %v877 = vadd.f32 %v776, %v845
      %v878 = vadd.f32 %v777, %v846
      %v879 = vadd.f32 %v778, %v847
      %v880 = vadd.f32 %v779, %v848
      %v881 = vadd.f32 %v780, %v849
      %v882 = vadd.f32 %v781, %v850
      %v883 = vadd.f32 %v782, %v851
      %v884 = vadd.f32 %v783, %v852
      %v885 = vadd.f32 %v784, %v853
      %v886 = vadd.f32 %v785, %v854
      %v887 = vadd.f32 %v786, %v855
      %v888 = vadd.f32 %v787, %v856
      %v889 = vadd.f32 %v788, %v857
      %v890 = vadd.f32 %v789, %v858
      %v891 = vadd.f32 %v790, %v859
      %v892 = vadd.f32 %v791, %v860
      %v893 = vadd.f32 %v792, %v861
      %v894 = vadd.f32 %v793, %v862
      %v895 = vadd.f32 %v794, %v863
      %v896 = vadd.f32 %v795, %v864
      %v897 = vadd.f32 %v796, %v865
      %v898 = vadd.f32 %v797, %v866
      %v899 = vadd.f32 %v798, %v867
      %v900 = vadd.f32 %v799, %v868
      %v901 = vadd.f32 %v800, %v869
      %v902 = vadd.f32 %v801, %v870
      %v903 = vld [vmem:[%s802 + $0x1] sm:$0xff]
      %v904 = vld [vmem:[%s802 + $0x9] sm:$0xff]
      %v905 = vld [vmem:[%s802 + $0x19] sm:$0xff]
      %v906 = vld [vmem:[%s802 + $0x21] sm:$0xff]
      %v907 = vld [vmem:[%s802 + $0x31] sm:$0xff]
      %v908 = vld [vmem:[%s802 + $0x39] sm:$0xff]
      %v909 = vld [vmem:[%s802 + $0x49] sm:$0xff]
      %v910 = vld [vmem:[%s802 + $0x51] sm:$0xff]
      %v911 = vld [vmem:[%s802 + $0x61] sm:$0xff]
      %v912 = vld [vmem:[%s802 + $0x69] sm:$0xff]
      %v913 = vld [vmem:[%s802 + $0x79] sm:$0xff]
      %v914 = vld [vmem:[%s802 + $0x81] sm:$0xff]
      %v915 = vld [vmem:[%s802 + $0x91] sm:$0xff]
      %v916 = vld [vmem:[%s802 + $0x99] sm:$0xff]
      %v917 = vld [vmem:[%s802 + $0xa9] sm:$0xff]
      %v918 = vld [vmem:[%s802 + $0xb1] sm:$0xff]
      %v919 = vld [vmem:[%s802 + $0xc1] sm:$0xff]
      %v920 = vld [vmem:[%s802 + $0xc9] sm:$0xff]
      %v921 = vld [vmem:[%s802 + $0xd9] sm:$0xff]
      %v922 = vld [vmem:[%s802 + $0xe1] sm:$0xff]
      %v923 = vld [vmem:[%s802 + $0xf1] sm:$0xff]
      %v924 = vld [vmem:[%s802 + $0xf9] sm:$0xff]
      %v925 = vld [vmem:[%s802 + $0x109] sm:$0xff]
      %v926 = vld [vmem:[%s802 + $0x111] sm:$0xff]
      %v927 = vld [vmem:[%s802 + $0x121] sm:$0xff]
      %v928 = vld [vmem:[%s802 + $0x129] sm:$0xff]
      %v929 = vld [vmem:[%s802 + $0x139] sm:$0xff]
      %v930 = vld [vmem:[%s802 + $0x141] sm:$0xff]
      %v931 = vld [vmem:[%s802 + $0x151] sm:$0xff]
      %v932 = vld [vmem:[%s802 + $0x159] sm:$0xff]
      %v933 = vld [vmem:[%s802 + $0x169] sm:$0xff]
      %v934 = vld [vmem:[%s802 + $0x171] sm:$0xff]
      %v935 = vlaneseq
      %v936 = vshrl.u32 %v935, 7
      %v937 = vsub.s32 1, %v936
      %v938 = vrot.slane %v200, %v937
      %v939 = vmul.f32 %v903, %v938
      %v940 = vmul.f32 %v904, %v938
      %v941 = vmul.f32 %v905, %v938
      %v942 = vmul.f32 %v906, %v938
      %v943 = vmul.f32 %v907, %v938
      %v944 = vmul.f32 %v908, %v938
      %v945 = vmul.f32 %v909, %v938
      %v946 = vmul.f32 %v910, %v938
      %v947 = vmul.f32 %v911, %v938
      %v948 = vmul.f32 %v912, %v938
      %v949 = vmul.f32 %v913, %v938
      %v950 = vmul.f32 %v914, %v938
      %v951 = vmul.f32 %v915, %v938
      %v952 = vmul.f32 %v916, %v938
      %v953 = vmul.f32 %v917, %v938
      %v954 = vmul.f32 %v918, %v938
      %v955 = vmul.f32 %v919, %v938
      %v956 = vmul.f32 %v920, %v938
      %v957 = vmul.f32 %v921, %v938
      %v958 = vmul.f32 %v922, %v938
      %v959 = vmul.f32 %v923, %v938
      %v960 = vmul.f32 %v924, %v938
      %v961 = vmul.f32 %v925, %v938
      %v962 = vmul.f32 %v926, %v938
      %v963 = vmul.f32 %v927, %v938
      %v964 = vmul.f32 %v928, %v938
      %v965 = vmul.f32 %v929, %v938
      %v966 = vmul.f32 %v930, %v938
      %v967 = vmul.f32 %v931, %v938
      %v968 = vmul.f32 %v932, %v938
      %v969 = vmul.f32 %v933, %v938
      %v970 = vmul.f32 %v934, %v938
      %v971 = vadd.f32 %v871, %v939
      %v972 = vadd.f32 %v872, %v940
      %v973 = vadd.f32 %v873, %v941
      %v974 = vadd.f32 %v874, %v942
      %v975 = vadd.f32 %v875, %v943
      %v976 = vadd.f32 %v876, %v944
      %v977 = vadd.f32 %v877, %v945
      %v978 = vadd.f32 %v878, %v946
      %v979 = vadd.f32 %v879, %v947
      %v980 = vadd.f32 %v880, %v948
      %v981 = vadd.f32 %v881, %v949
      %v982 = vadd.f32 %v882, %v950
      %v983 = vadd.f32 %v883, %v951
      %v984 = vadd.f32 %v884, %v952
      %v985 = vadd.f32 %v885, %v953
      %v986 = vadd.f32 %v886, %v954
      %v987 = vadd.f32 %v887, %v955
      %v988 = vadd.f32 %v888, %v956
      %v989 = vadd.f32 %v889, %v957
      %v990 = vadd.f32 %v890, %v958
      %v991 = vadd.f32 %v891, %v959
      %v992 = vadd.f32 %v892, %v960
      %v993 = vadd.f32 %v893, %v961
      %v994 = vadd.f32 %v894, %v962
      %v995 = vadd.f32 %v895, %v963
      %v996 = vadd.f32 %v896, %v964
      %v997 = vadd.f32 %v897, %v965
      %v998 = vadd.f32 %v898, %v966
      %v999 = vadd.f32 %v899, %v967
      %v1000 = vadd.f32 %v900, %v968
      %v1001 = vadd.f32 %v901, %v969
      %v1002 = vadd.f32 %v902, %v970
      %v1003 = vld [vmem:[%s802 + $0x2] sm:$0xff]
      %v1004 = vld [vmem:[%s802 + $0xa] sm:$0xff]
      %v1005 = vld [vmem:[%s802 + $0x1a] sm:$0xff]
      %v1006 = vld [vmem:[%s802 + $0x22] sm:$0xff]
      %v1007 = vld [vmem:[%s802 + $0x32] sm:$0xff]
      %v1008 = vld [vmem:[%s802 + $0x3a] sm:$0xff]
      %v1009 = vld [vmem:[%s802 + $0x4a] sm:$0xff]
      %v1010 = vld [vmem:[%s802 + $0x52] sm:$0xff]
      %v1011 = vld [vmem:[%s802 + $0x62] sm:$0xff]
      %v1012 = vld [vmem:[%s802 + $0x6a] sm:$0xff]
      %v1013 = vld [vmem:[%s802 + $0x7a] sm:$0xff]
      %v1014 = vld [vmem:[%s802 + $0x82] sm:$0xff]
      %v1015 = vld [vmem:[%s802 + $0x92] sm:$0xff]
      %v1016 = vld [vmem:[%s802 + $0x9a] sm:$0xff]
      %v1017 = vld [vmem:[%s802 + $0xaa] sm:$0xff]
      %v1018 = vld [vmem:[%s802 + $0xb2] sm:$0xff]
      %v1019 = vld [vmem:[%s802 + $0xc2] sm:$0xff]
      %v1020 = vld [vmem:[%s802 + $0xca] sm:$0xff]
      %v1021 = vld [vmem:[%s802 + $0xda] sm:$0xff]
      %v1022 = vld [vmem:[%s802 + $0xe2] sm:$0xff]
      %v1023 = vld [vmem:[%s802 + $0xf2] sm:$0xff]
      %v1024 = vld [vmem:[%s802 + $0xfa] sm:$0xff]
      %v1025 = vld [vmem:[%s802 + $0x10a] sm:$0xff]
      %v1026 = vld [vmem:[%s802 + $0x112] sm:$0xff]
      %v1027 = vld [vmem:[%s802 + $0x122] sm:$0xff]
      %v1028 = vld [vmem:[%s802 + $0x12a] sm:$0xff]
      %v1029 = vld [vmem:[%s802 + $0x13a] sm:$0xff]
      %v1030 = vld [vmem:[%s802 + $0x142] sm:$0xff]
      %v1031 = vld [vmem:[%s802 + $0x152] sm:$0xff]
      %v1032 = vld [vmem:[%s802 + $0x15a] sm:$0xff]
      %v1033 = vld [vmem:[%s802 + $0x16a] sm:$0xff]
      %v1034 = vld [vmem:[%s802 + $0x172] sm:$0xff]
      %v1035 = vlaneseq
      %v1036 = vshrl.u32 %v1035, 7
      %v1037 = vsub.s32 2, %v1036
      %v1038 = vrot.slane %v200, %v1037
      %v1039 = vmul.f32 %v1003, %v1038
      %v1040 = vmul.f32 %v1004, %v1038
      %v1041 = vmul.f32 %v1005, %v1038
      %v1042 = vmul.f32 %v1006, %v1038
      %v1043 = vmul.f32 %v1007, %v1038
      %v1044 = vmul.f32 %v1008, %v1038
      %v1045 = vmul.f32 %v1009, %v1038
      %v1046 = vmul.f32 %v1010, %v1038
      %v1047 = vmul.f32 %v1011, %v1038
      %v1048 = vmul.f32 %v1012, %v1038
      %v1049 = vmul.f32 %v1013, %v1038
      %v1050 = vmul.f32 %v1014, %v1038
      %v1051 = vmul.f32 %v1015, %v1038
      %v1052 = vmul.f32 %v1016, %v1038
      %v1053 = vmul.f32 %v1017, %v1038
      %v1054 = vmul.f32 %v1018, %v1038
      %v1055 = vmul.f32 %v1019, %v1038
      %v1056 = vmul.f32 %v1020, %v1038
      %v1057 = vmul.f32 %v1021, %v1038
      %v1058 = vmul.f32 %v1022, %v1038
      %v1059 = vmul.f32 %v1023, %v1038
      %v1060 = vmul.f32 %v1024, %v1038
      %v1061 = vmul.f32 %v1025, %v1038
      %v1062 = vmul.f32 %v1026, %v1038
      %v1063 = vmul.f32 %v1027, %v1038
      %v1064 = vmul.f32 %v1028, %v1038
      %v1065 = vmul.f32 %v1029, %v1038
      %v1066 = vmul.f32 %v1030, %v1038
      %v1067 = vmul.f32 %v1031, %v1038
      %v1068 = vmul.f32 %v1032, %v1038
      %v1069 = vmul.f32 %v1033, %v1038
      %v1070 = vmul.f32 %v1034, %v1038
      %v1071 = vadd.f32 %v971, %v1039
      %v1072 = vadd.f32 %v972, %v1040
      %v1073 = vadd.f32 %v973, %v1041
      %v1074 = vadd.f32 %v974, %v1042
      %v1075 = vadd.f32 %v975, %v1043
      %v1076 = vadd.f32 %v976, %v1044
      %v1077 = vadd.f32 %v977, %v1045
      %v1078 = vadd.f32 %v978, %v1046
      %v1079 = vadd.f32 %v979, %v1047
      %v1080 = vadd.f32 %v980, %v1048
      %v1081 = vadd.f32 %v981, %v1049
      %v1082 = vadd.f32 %v982, %v1050
      %v1083 = vadd.f32 %v983, %v1051
      %v1084 = vadd.f32 %v984, %v1052
      %v1085 = vadd.f32 %v985, %v1053
      %v1086 = vadd.f32 %v986, %v1054
      %v1087 = vadd.f32 %v987, %v1055
      %v1088 = vadd.f32 %v988, %v1056
      %v1089 = vadd.f32 %v989, %v1057
      %v1090 = vadd.f32 %v990, %v1058
      %v1091 = vadd.f32 %v991, %v1059
      %v1092 = vadd.f32 %v992, %v1060
      %v1093 = vadd.f32 %v993, %v1061
      %v1094 = vadd.f32 %v994, %v1062
      %v1095 = vadd.f32 %v995, %v1063
      %v1096 = vadd.f32 %v996, %v1064
      %v1097 = vadd.f32 %v997, %v1065
      %v1098 = vadd.f32 %v998, %v1066
      %v1099 = vadd.f32 %v999, %v1067
      %v1100 = vadd.f32 %v1000, %v1068
      %v1101 = vadd.f32 %v1001, %v1069
      %v1102 = vadd.f32 %v1002, %v1070
      %v1103 = vld [vmem:[%s2] sm:$0xf]
      %v1104 = vld [vmem:[%s3] sm:$0x1]
      %v1106 = vlaneseq
      %v1107 = vshrl.u32 %v1106, 7
      %v1108 = vsub.s32 0, %v1107
      %v1109 = vrot.slane %v1104, %v1108
      %vm1111 = vcmask 31744
      %v1113 = vsel %vm1111, %v1071, 0
      %v1116 = vsel %vm1111, %v1072, 0
      %v1119 = vsel %vm1111, %v1073, 0
      %v1122 = vsel %vm1111, %v1074, 0
      %v1125 = vsel %vm1111, %v1075, 0
      %v1128 = vsel %vm1111, %v1076, 0
      %v1131 = vsel %vm1111, %v1077, 0
      %v1134 = vsel %vm1111, %v1078, 0
      %v1137 = vsel %vm1111, %v1079, 0
      %v1140 = vsel %vm1111, %v1080, 0
      %v1143 = vsel %vm1111, %v1081, 0
      %v1146 = vsel %vm1111, %v1082, 0
      %v1149 = vsel %vm1111, %v1083, 0
      %v1152 = vsel %vm1111, %v1084, 0
      %v1155 = vsel %vm1111, %v1085, 0
      %v1158 = vsel %vm1111, %v1086, 0
      %v1161 = vsel %vm1111, %v1087, 0
      %v1164 = vsel %vm1111, %v1088, 0
      %v1167 = vsel %vm1111, %v1089, 0
      %v1170 = vsel %vm1111, %v1090, 0
      %v1173 = vsel %vm1111, %v1091, 0
      %v1176 = vsel %vm1111, %v1092, 0
      %v1179 = vsel %vm1111, %v1093, 0
      %v1182 = vsel %vm1111, %v1094, 0
      %v1185 = vsel %vm1111, %v1095, 0
      %v1188 = vsel %vm1111, %v1096, 0
      %v1191 = vsel %vm1111, %v1097, 0
      %v1194 = vsel %vm1111, %v1098, 0
      %v1197 = vsel %vm1111, %v1099, 0
      %v1200 = vsel %vm1111, %v1100, 0
      %v1203 = vsel %vm1111, %v1101, 0
      %v1206 = vsel %vm1111, %v1102, 0
      %vm1208 = vcmask 1043456
      %v1210 = vsel %vm1208, %v1103, 0
      %1212 = vmatprep.subr.mxu0 0.0
      %1213 = vmatpush1.msra.mxu0 %v1210
      %1214 = vmatprep.subr.mxu0 0.0
      %1215 = vmatpush1.msra.mxu0 0.0
      %1216 = vmatprep.subr.mxu0 0.0
      %1217 = vmatpush1.msra.mxu0 0.0
      %1218 = vmatprep.subr.mxu0 0.0
      %1219 = vmatpush1.msra.mxu0 0.0
      %1220 = vmatprep.subr.mxu0 0.0
      %1221 = vmatpush1.msra.mxu0 0.0
      %1222 = vmatprep.subr.mxu0 0.0
      %1223 = vmatpush1.msra.mxu0 0.0
      %1224 = vmatprep.subr.mxu0 0.0
      %1225 = vmatpush1.msra.mxu0 0.0
      %1226 = vmatprep.subr.mxu0 0.0
      %1227 = vmatpush1.msra.mxu0 0.0
      %1228 = vmatprep.subr.mxu0 0.0
      %1229 = vmatpush1.msra.mxu0 0.0
      %1230 = vmatprep.subr.mxu0 0.0
      %1231 = vmatpush1.msra.mxu0 0.0
      %1232 = vmatprep.subr.mxu0 0.0
      %1233 = vmatpush1.msra.mxu0 0.0
      %1234 = vmatprep.subr.mxu0 0.0
      %1235 = vmatpush1.msra.mxu0 0.0
      %1236 = vmatprep.subr.mxu0 0.0
      %1237 = vmatpush1.msra.mxu0 0.0
      %1238 = vmatprep.subr.mxu0 0.0
      %1239 = vmatpush1.msra.mxu0 0.0
      %1240 = vmatprep.subr.mxu0 0.0
      %1241 = vmatpush1.msra.mxu0 0.0
      %1242 = vmatprep.subr.mxu0 0.0
      %1243 = vmatpush1.msra.mxu0 0.0
      %1244 = vmatprep.subr.mxu0 0.0
      %1245 = vmatpush1.msra.mxu0 0.0
      %1246 = vmatprep.subr.mxu0 0.0
      %1247 = vmatpush1.msra.mxu0 0.0
      %1248 = vmatprep.subr.mxu0 0.0
      %1249 = vmatpush1.msra.mxu0 0.0
      %1250 = vmatprep.subr.mxu0 0.0
      %1251 = vmatpush1.msra.mxu0 0.0
      %1252 = vmatprep.subr.mxu0 0.0
      %1253 = vmatpush1.msra.mxu0 0.0
      %1254 = vmatprep.subr.mxu0 0.0
      %1255 = vmatpush1.msra.mxu0 0.0
      %1256 = vmatprep.subr.mxu0 0.0
      %1257 = vmatpush1.msra.mxu0 0.0
      %1258 = vmatprep.subr.mxu0 0.0
      %1259 = vmatpush1.msra.mxu0 0.0
      %1260 = vmatprep.subr.mxu0 0.0
      %1261 = vmatpush1.msra.mxu0 0.0
      %1262 = vmatprep.subr.mxu0 0.0
      %1263 = vmatpush1.msra.mxu0 0.0
      %1264 = vmatprep.subr.mxu0 0.0
      %1265 = vmatpush1.msra.mxu0 0.0
      %1266 = vmatprep.subr.mxu0 0.0
      %1267 = vmatpush1.msra.mxu0 0.0
      %1268 = vmatprep.subr.mxu0 0.0
      %1269 = vmatpush1.msra.mxu0 0.0
      %1270 = vmatprep.subr.mxu0 0.0
      %1271 = vmatpush1.msra.mxu0 0.0
      %1272 = vmatprep.subr.mxu0 0.0
      %1273 = vmatpush1.msra.mxu0 0.0
      %1274 = vmatprep.subr.mxu0 0.0
      %1275 = vmatpush1.msra.mxu0 0.0
      %1276 = vmatprep.mubr.f32.mxu0 0.0
      %1277 = vmatmul.mubr.f32.gmra.mrb[0].mxu0 %v1113
      %v1278 = vpop.f32.mrb[0].mxu0
      %v1279 = vadd.f32 %v1109, %v1278
      %v1280 = vpop.f32.mrb[0].mxu0
      %1281 = vmatprep.mubr.f32.mxu0 0.0
      %1282 = vmatmul.mubr.f32.gmra.mrb[0].mxu0 %v1116
      %v1283 = vpop.f32.mrb[0].mxu0
      %v1284 = vadd.f32 %v1109, %v1283
      %v1285 = vpop.f32.mrb[0].mxu0
      %1286 = vmatprep.mubr.f32.mxu0 0.0
      %1287 = vmatmul.mubr.f32.gmra.mrb[0].mxu0 %v1119
      %v1288 = vpop.f32.mrb[0].mxu0
      %v1289 = vadd.f32 %v1109, %v1288
      %v1290 = vpop.f32.mrb[0].mxu0
      %1291 = vmatprep.mubr.f32.mxu0 0.0
      %1292 = vmatmul.mubr.f32.gmra.mrb[0].mxu0 %v1122
      %v1293 = vpop.f32.mrb[0].mxu0
      %v1294 = vadd.f32 %v1109, %v1293
      %v1295 = vpop.f32.mrb[0].mxu0
      %1296 = vmatprep.mubr.f32.mxu0 0.0
      %1297 = vmatmul.mubr.f32.gmra.mrb[0].mxu0 %v1125
      %v1298 = vpop.f32.mrb[0].mxu0
      %v1299 = vadd.f32 %v1109, %v1298
      %v1300 = vpop.f32.mrb[0].mxu0
      %1301 = vmatprep.mubr.f32.mxu0 0.0
      %1302 = vmatmul.mubr.f32.gmra.mrb[0].mxu0 %v1128
      %v1303 = vpop.f32.mrb[0].mxu0
      %v1304 = vadd.f32 %v1109, %v1303
      %v1305 = vpop.f32.mrb[0].mxu0
      %1306 = vmatprep.mubr.f32.mxu0 0.0
      %1307 = vmatmul.mubr.f32.gmra.mrb[0].mxu0 %v1131
      %v1308 = vpop.f32.mrb[0].mxu0
      %v1309 = vadd.f32 %v1109, %v1308
      %v1310 = vpop.f32.mrb[0].mxu0
      %1311 = vmatprep.mubr.f32.mxu0 0.0
      %1312 = vmatmul.mubr.f32.gmra.mrb[0].mxu0 %v1134
      %v1313 = vpop.f32.mrb[0].mxu0
      %v1314 = vadd.f32 %v1109, %v1313
      %v1315 = vpop.f32.mrb[0].mxu0
      %1316 = vmatprep.mubr.f32.mxu0 0.0
      %1317 = vmatmul.mubr.f32.gmra.mrb[0].mxu0 %v1137
      %v1318 = vpop.f32.mrb[0].mxu0
      %v1319 = vadd.f32 %v1109, %v1318
      %v1320 = vpop.f32.mrb[0].mxu0
      %1321 = vmatprep.mubr.f32.mxu0 0.0
      %1322 = vmatmul.mubr.f32.gmra.mrb[0].mxu0 %v1140
      %v1323 = vpop.f32.mrb[0].mxu0
      %v1324 = vadd.f32 %v1109, %v1323
      %v1325 = vpop.f32.mrb[0].mxu0
      %1326 = vmatprep.mubr.f32.mxu0 0.0
      %1327 = vmatmul.mubr.f32.gmra.mrb[0].mxu0 %v1143
      %v1328 = vpop.f32.mrb[0].mxu0
      %v1329 = vadd.f32 %v1109, %v1328
      %v1330 = vpop.f32.mrb[0].mxu0
      %1331 = vmatprep.mubr.f32.mxu0 0.0
      %1332 = vmatmul.mubr.f32.gmra.mrb[0].mxu0 %v1146
      %v1333 = vpop.f32.mrb[0].mxu0
      %v1334 = vadd.f32 %v1109, %v1333
      %v1335 = vpop.f32.mrb[0].mxu0
      %1336 = vmatprep.mubr.f32.mxu0 0.0
      %1337 = vmatmul.mubr.f32.gmra.mrb[0].mxu0 %v1149
      %v1338 = vpop.f32.mrb[0].mxu0
      %v1339 = vadd.f32 %v1109, %v1338
      %v1340 = vpop.f32.mrb[0].mxu0
      %1341 = vmatprep.mubr.f32.mxu0 0.0
      %1342 = vmatmul.mubr.f32.gmra.mrb[0].mxu0 %v1152
      %v1343 = vpop.f32.mrb[0].mxu0
      %v1344 = vadd.f32 %v1109, %v1343
      %v1345 = vpop.f32.mrb[0].mxu0
      %1346 = vmatprep.mubr.f32.mxu0 0.0
      %1347 = vmatmul.mubr.f32.gmra.mrb[0].mxu0 %v1155
      %v1348 = vpop.f32.mrb[0].mxu0
      %v1349 = vadd.f32 %v1109, %v1348
      %v1350 = vpop.f32.mrb[0].mxu0
      %1351 = vmatprep.mubr.f32.mxu0 0.0
      %1352 = vmatmul.mubr.f32.gmra.mrb[0].mxu0 %v1158
      %v1353 = vpop.f32.mrb[0].mxu0
      %v1354 = vadd.f32 %v1109, %v1353
      %v1355 = vpop.f32.mrb[0].mxu0
      %1356 = vmatprep.mubr.f32.mxu0 0.0
      %1357 = vmatmul.mubr.f32.gmra.mrb[0].mxu0 %v1161
      %v1358 = vpop.f32.mrb[0].mxu0
      %v1359 = vadd.f32 %v1109, %v1358
      %v1360 = vpop.f32.mrb[0].mxu0
      %1361 = vmatprep.mubr.f32.mxu0 0.0
      %1362 = vmatmul.mubr.f32.gmra.mrb[0].mxu0 %v1164
      %v1363 = vpop.f32.mrb[0].mxu0
      %v1364 = vadd.f32 %v1109, %v1363
      %v1365 = vpop.f32.mrb[0].mxu0
      %1366 = vmatprep.mubr.f32.mxu0 0.0
      %1367 = vmatmul.mubr.f32.gmra.mrb[0].mxu0 %v1167
      %v1368 = vpop.f32.mrb[0].mxu0
      %v1369 = vadd.f32 %v1109, %v1368
      %v1370 = vpop.f32.mrb[0].mxu0
      %1371 = vmatprep.mubr.f32.mxu0 0.0
      %1372 = vmatmul.mubr.f32.gmra.mrb[0].mxu0 %v1170
      %v1373 = vpop.f32.mrb[0].mxu0
      %v1374 = vadd.f32 %v1109, %v1373
      %v1375 = vpop.f32.mrb[0].mxu0
      %1376 = vmatprep.mubr.f32.mxu0 0.0
      %1377 = vmatmul.mubr.f32.gmra.mrb[0].mxu0 %v1173
      %v1378 = vpop.f32.mrb[0].mxu0
      %v1379 = vadd.f32 %v1109, %v1378
      %v1380 = vpop.f32.mrb[0].mxu0
      %1381 = vmatprep.mubr.f32.mxu0 0.0
      %1382 = vmatmul.mubr.f32.gmra.mrb[0].mxu0 %v1176
      %v1383 = vpop.f32.mrb[0].mxu0
      %v1384 = vadd.f32 %v1109, %v1383
      %v1385 = vpop.f32.mrb[0].mxu0
      %1386 = vmatprep.mubr.f32.mxu0 0.0
      %1387 = vmatmul.mubr.f32.gmra.mrb[0].mxu0 %v1179
      %v1388 = vpop.f32.mrb[0].mxu0
      %v1389 = vadd.f32 %v1109, %v1388
      %v1390 = vpop.f32.mrb[0].mxu0
      %1391 = vmatprep.mubr.f32.mxu0 0.0
      %1392 = vmatmul.mubr.f32.gmra.mrb[0].mxu0 %v1182
      %v1393 = vpop.f32.mrb[0].mxu0
      %v1394 = vadd.f32 %v1109, %v1393
      %v1395 = vpop.f32.mrb[0].mxu0
      %1396 = vmatprep.mubr.f32.mxu0 0.0
      %1397 = vmatmul.mubr.f32.gmra.mrb[0].mxu0 %v1185
      %v1398 = vpop.f32.mrb[0].mxu0
      %v1399 = vadd.f32 %v1109, %v1398
      %v1400 = vpop.f32.mrb[0].mxu0
      %1401 = vmatprep.mubr.f32.mxu0 0.0
      %1402 = vmatmul.mubr.f32.gmra.mrb[0].mxu0 %v1188
      %v1403 = vpop.f32.mrb[0].mxu0
      %v1404 = vadd.f32 %v1109, %v1403
      %v1405 = vpop.f32.mrb[0].mxu0
      %1406 = vmatprep.mubr.f32.mxu0 0.0
      %1407 = vmatmul.mubr.f32.gmra.mrb[0].mxu0 %v1191
      %v1408 = vpop.f32.mrb[0].mxu0
      %v1409 = vadd.f32 %v1109, %v1408
      %v1410 = vpop.f32.mrb[0].mxu0
      %1411 = vmatprep.mubr.f32.mxu0 0.0
      %1412 = vmatmul.mubr.f32.gmra.mrb[0].mxu0 %v1194
      %v1413 = vpop.f32.mrb[0].mxu0
      %v1414 = vadd.f32 %v1109, %v1413
      %v1415 = vpop.f32.mrb[0].mxu0
      %1416 = vmatprep.mubr.f32.mxu0 0.0
      %1417 = vmatmul.mubr.f32.gmra.mrb[0].mxu0 %v1197
      %v1418 = vpop.f32.mrb[0].mxu0
      %v1419 = vadd.f32 %v1109, %v1418
      %v1420 = vpop.f32.mrb[0].mxu0
      %1421 = vmatprep.mubr.f32.mxu0 0.0
      %1422 = vmatmul.mubr.f32.gmra.mrb[0].mxu0 %v1200
      %v1423 = vpop.f32.mrb[0].mxu0
      %v1424 = vadd.f32 %v1109, %v1423
      %v1425 = vpop.f32.mrb[0].mxu0
      %1426 = vmatprep.mubr.f32.mxu0 0.0
      %1427 = vmatmul.mubr.f32.gmra.mrb[0].mxu0 %v1203
      %v1428 = vpop.f32.mrb[0].mxu0
      %v1429 = vadd.f32 %v1109, %v1428
      %v1430 = vpop.f32.mrb[0].mxu0
      %1431 = vmatprep.mubr.f32.mxu0 0.0
      %1432 = vmatmul.mubr.f32.gmra.mrb[0].mxu0 %v1206
      %v1433 = vpop.f32.mrb[0].mxu0
      %v1434 = vadd.f32 %v1109, %v1433
      %v1435 = vpop.f32.mrb[0].mxu0
      %1436 = vdwg.mxu0
      %v1437 = vxor.u32 %v1279, 2147483648
      %v1438 = vxor.u32 %v1284, 2147483648
      %v1439 = vxor.u32 %v1289, 2147483648
      %v1440 = vxor.u32 %v1294, 2147483648
      %v1441 = vxor.u32 %v1299, 2147483648
      %v1442 = vxor.u32 %v1304, 2147483648
      %v1443 = vxor.u32 %v1309, 2147483648
      %v1444 = vxor.u32 %v1314, 2147483648
      %v1445 = vxor.u32 %v1319, 2147483648
      %v1446 = vxor.u32 %v1324, 2147483648
      %v1447 = vxor.u32 %v1329, 2147483648
      %v1448 = vxor.u32 %v1334, 2147483648
      %v1449 = vxor.u32 %v1339, 2147483648
      %v1450 = vxor.u32 %v1344, 2147483648
      %v1451 = vxor.u32 %v1349, 2147483648
      %v1452 = vxor.u32 %v1354, 2147483648
      %v1453 = vxor.u32 %v1359, 2147483648
      %v1454 = vxor.u32 %v1364, 2147483648
      %v1455 = vxor.u32 %v1369, 2147483648
      %v1456 = vxor.u32 %v1374, 2147483648
      %v1457 = vxor.u32 %v1379, 2147483648
      %v1458 = vxor.u32 %v1384, 2147483648
      %v1459 = vxor.u32 %v1389, 2147483648
      %v1460 = vxor.u32 %v1394, 2147483648
      %v1461 = vxor.u32 %v1399, 2147483648
      %v1462 = vxor.u32 %v1404, 2147483648
      %v1463 = vxor.u32 %v1409, 2147483648
      %v1464 = vxor.u32 %v1414, 2147483648
      %v1465 = vxor.u32 %v1419, 2147483648
      %v1466 = vxor.u32 %v1424, 2147483648
      %v1467 = vxor.u32 %v1429, 2147483648
      %v1468 = vxor.u32 %v1434, 2147483648
      %v1469 = vmul.f32 %v1437, 1.442695
      %v1470 = vpow.pop %v1469
      %v1471 = vmul.f32 %v1438, 1.442695
      %v1472 = vpow.pop %v1471
      %v1473 = vmul.f32 %v1439, 1.442695
      %v1474 = vpow.pop %v1473
      %v1475 = vmul.f32 %v1440, 1.442695
      %v1476 = vpow.pop %v1475
      %v1477 = vmul.f32 %v1441, 1.442695
      %v1478 = vpow.pop %v1477
      %v1479 = vmul.f32 %v1442, 1.442695
      %v1480 = vpow.pop %v1479
      %v1481 = vmul.f32 %v1443, 1.442695
      %v1482 = vpow.pop %v1481
      %v1483 = vmul.f32 %v1444, 1.442695
      %v1484 = vpow.pop %v1483
      %v1485 = vmul.f32 %v1445, 1.442695
      %v1486 = vpow.pop %v1485
      %v1487 = vmul.f32 %v1446, 1.442695
      %v1488 = vpow.pop %v1487
      %v1489 = vmul.f32 %v1447, 1.442695
      %v1490 = vpow.pop %v1489
      %v1491 = vmul.f32 %v1448, 1.442695
      %v1492 = vpow.pop %v1491
      %v1493 = vmul.f32 %v1449, 1.442695
      %v1494 = vpow.pop %v1493
      %v1495 = vmul.f32 %v1450, 1.442695
      %v1496 = vpow.pop %v1495
      %v1497 = vmul.f32 %v1451, 1.442695
      %v1498 = vpow.pop %v1497
      %v1499 = vmul.f32 %v1452, 1.442695
      %v1500 = vpow.pop %v1499
      %v1501 = vmul.f32 %v1453, 1.442695
      %v1502 = vpow.pop %v1501
      %v1503 = vmul.f32 %v1454, 1.442695
      %v1504 = vpow.pop %v1503
      %v1505 = vmul.f32 %v1455, 1.442695
      %v1506 = vpow.pop %v1505
      %v1507 = vmul.f32 %v1456, 1.442695
      %v1508 = vpow.pop %v1507
      %v1509 = vmul.f32 %v1457, 1.442695
      %v1510 = vpow.pop %v1509
      %v1511 = vmul.f32 %v1458, 1.442695
      %v1512 = vpow.pop %v1511
      %v1513 = vmul.f32 %v1459, 1.442695
      %v1514 = vpow.pop %v1513
      %v1515 = vmul.f32 %v1460, 1.442695
      %v1516 = vpow.pop %v1515
      %v1517 = vmul.f32 %v1461, 1.442695
      %v1518 = vpow.pop %v1517
      %v1519 = vmul.f32 %v1462, 1.442695
      %v1520 = vpow.pop %v1519
      %v1521 = vmul.f32 %v1463, 1.442695
      %v1522 = vpow.pop %v1521
      %v1523 = vmul.f32 %v1464, 1.442695
      %v1524 = vpow.pop %v1523
      %v1525 = vmul.f32 %v1465, 1.442695
      %v1526 = vpow.pop %v1525
      %v1527 = vmul.f32 %v1466, 1.442695
      %v1528 = vpow.pop %v1527
      %v1529 = vmul.f32 %v1467, 1.442695
      %v1530 = vpow.pop %v1529
      %v1531 = vmul.f32 %v1468, 1.442695
      %v1532 = vpow.pop %v1531
      %v1533 = vadd.f32 %v1470, 1.0
      %v1534 = vadd.f32 %v1472, 1.0
      %v1535 = vadd.f32 %v1474, 1.0
      %v1536 = vadd.f32 %v1476, 1.0
      %v1537 = vadd.f32 %v1478, 1.0
      %v1538 = vadd.f32 %v1480, 1.0
      %v1539 = vadd.f32 %v1482, 1.0
      %v1540 = vadd.f32 %v1484, 1.0
      %v1541 = vadd.f32 %v1486, 1.0
      %v1542 = vadd.f32 %v1488, 1.0
      %v1543 = vadd.f32 %v1490, 1.0
      %v1544 = vadd.f32 %v1492, 1.0
      %v1545 = vadd.f32 %v1494, 1.0
      %v1546 = vadd.f32 %v1496, 1.0
      %v1547 = vadd.f32 %v1498, 1.0
      %v1548 = vadd.f32 %v1500, 1.0
      %v1549 = vadd.f32 %v1502, 1.0
      %v1550 = vadd.f32 %v1504, 1.0
      %v1551 = vadd.f32 %v1506, 1.0
      %v1552 = vadd.f32 %v1508, 1.0
      %v1553 = vadd.f32 %v1510, 1.0
      %v1554 = vadd.f32 %v1512, 1.0
      %v1555 = vadd.f32 %v1514, 1.0
      %v1556 = vadd.f32 %v1516, 1.0
      %v1557 = vadd.f32 %v1518, 1.0
      %v1558 = vadd.f32 %v1520, 1.0
      %v1559 = vadd.f32 %v1522, 1.0
      %v1560 = vadd.f32 %v1524, 1.0
      %v1561 = vadd.f32 %v1526, 1.0
      %v1562 = vadd.f32 %v1528, 1.0
      %v1563 = vadd.f32 %v1530, 1.0
      %v1564 = vadd.f32 %v1532, 1.0
      %v1565 = vrcp.pop %v1533
      %v1566 = vmul.f32 1.0, %v1565
      %v1567 = vrcp.pop %v1534
      %v1568 = vmul.f32 1.0, %v1567
      %v1569 = vrcp.pop %v1535
      %v1570 = vmul.f32 1.0, %v1569
      %v1571 = vrcp.pop %v1536
      %v1572 = vmul.f32 1.0, %v1571
      %v1573 = vrcp.pop %v1537
      %v1574 = vmul.f32 1.0, %v1573
      %v1575 = vrcp.pop %v1538
      %v1576 = vmul.f32 1.0, %v1575
      %v1577 = vrcp.pop %v1539
      %v1578 = vmul.f32 1.0, %v1577
      %v1579 = vrcp.pop %v1540
      %v1580 = vmul.f32 1.0, %v1579
      %v1581 = vrcp.pop %v1541
      %v1582 = vmul.f32 1.0, %v1581
      %v1583 = vrcp.pop %v1542
      %v1584 = vmul.f32 1.0, %v1583
      %v1585 = vrcp.pop %v1543
      %v1586 = vmul.f32 1.0, %v1585
      %v1587 = vrcp.pop %v1544
      %v1588 = vmul.f32 1.0, %v1587
      %v1589 = vrcp.pop %v1545
      %v1590 = vmul.f32 1.0, %v1589
      %v1591 = vrcp.pop %v1546
      %v1592 = vmul.f32 1.0, %v1591
      %v1593 = vrcp.pop %v1547
      %v1594 = vmul.f32 1.0, %v1593
      %v1595 = vrcp.pop %v1548
      %v1596 = vmul.f32 1.0, %v1595
      %v1597 = vrcp.pop %v1549
      %v1598 = vmul.f32 1.0, %v1597
      %v1599 = vrcp.pop %v1550
      %v1600 = vmul.f32 1.0, %v1599
      %v1601 = vrcp.pop %v1551
      %v1602 = vmul.f32 1.0, %v1601
      %v1603 = vrcp.pop %v1552
      %v1604 = vmul.f32 1.0, %v1603
      %v1605 = vrcp.pop %v1553
      %v1606 = vmul.f32 1.0, %v1605
      %v1607 = vrcp.pop %v1554
      %v1608 = vmul.f32 1.0, %v1607
      %v1609 = vrcp.pop %v1555
      %v1610 = vmul.f32 1.0, %v1609
      %v1611 = vrcp.pop %v1556
      %v1612 = vmul.f32 1.0, %v1611
      %v1613 = vrcp.pop %v1557
      %v1614 = vmul.f32 1.0, %v1613
      %v1615 = vrcp.pop %v1558
      %v1616 = vmul.f32 1.0, %v1615
      %v1617 = vrcp.pop %v1559
      %v1618 = vmul.f32 1.0, %v1617
      %v1619 = vrcp.pop %v1560
      %v1620 = vmul.f32 1.0, %v1619
      %v1621 = vrcp.pop %v1561
      %v1622 = vmul.f32 1.0, %v1621
      %v1623 = vrcp.pop %v1562
      %v1624 = vmul.f32 1.0, %v1623
      %v1625 = vrcp.pop %v1563
      %v1626 = vmul.f32 1.0, %v1625
      %v1627 = vrcp.pop %v1564
      %v1628 = vmul.f32 1.0, %v1627
      %v1629 = vmul.f32 %v1279, %v1566
      %v1630 = vmul.f32 %v1284, %v1568
      %v1631 = vmul.f32 %v1289, %v1570
      %v1632 = vmul.f32 %v1294, %v1572
      %v1633 = vmul.f32 %v1299, %v1574
      %v1634 = vmul.f32 %v1304, %v1576
      %v1635 = vmul.f32 %v1309, %v1578
      %v1636 = vmul.f32 %v1314, %v1580
      %v1637 = vmul.f32 %v1319, %v1582
      %v1638 = vmul.f32 %v1324, %v1584
      %v1639 = vmul.f32 %v1329, %v1586
      %v1640 = vmul.f32 %v1334, %v1588
      %v1641 = vmul.f32 %v1339, %v1590
      %v1642 = vmul.f32 %v1344, %v1592
      %v1643 = vmul.f32 %v1349, %v1594
      %v1644 = vmul.f32 %v1354, %v1596
      %v1645 = vmul.f32 %v1359, %v1598
      %v1646 = vmul.f32 %v1364, %v1600
      %v1647 = vmul.f32 %v1369, %v1602
      %v1648 = vmul.f32 %v1374, %v1604
      %v1649 = vmul.f32 %v1379, %v1606
      %v1650 = vmul.f32 %v1384, %v1608
      %v1651 = vmul.f32 %v1389, %v1610
      %v1652 = vmul.f32 %v1394, %v1612
      %v1653 = vmul.f32 %v1399, %v1614
      %v1654 = vmul.f32 %v1404, %v1616
      %v1655 = vmul.f32 %v1409, %v1618
      %v1656 = vmul.f32 %v1414, %v1620
      %v1657 = vmul.f32 %v1419, %v1622
      %v1658 = vmul.f32 %v1424, %v1624
      %v1659 = vmul.f32 %v1429, %v1626
      %v1660 = vmul.f32 %v1434, %v1628
      %1661 = vst.msk [vmem:[%s197] sm:$0xff] %vm1111, %v1629
      %1662 = vst.msk [vmem:[%s197 + $0x8] sm:$0xff] %vm1111, %v1630
      %1663 = vst.msk [vmem:[%s197 + $0x10] sm:$0xff] %vm1111, %v1631
      %1664 = vst.msk [vmem:[%s197 + $0x18] sm:$0xff] %vm1111, %v1632
      %1665 = vst.msk [vmem:[%s197 + $0x20] sm:$0xff] %vm1111, %v1633
      %1666 = vst.msk [vmem:[%s197 + $0x28] sm:$0xff] %vm1111, %v1634
      %1667 = vst.msk [vmem:[%s197 + $0x30] sm:$0xff] %vm1111, %v1635
      %1668 = vst.msk [vmem:[%s197 + $0x38] sm:$0xff] %vm1111, %v1636
      %1669 = vst.msk [vmem:[%s197 + $0x40] sm:$0xff] %vm1111, %v1637
      %1670 = vst.msk [vmem:[%s197 + $0x48] sm:$0xff] %vm1111, %v1638
      %1671 = vst.msk [vmem:[%s197 + $0x50] sm:$0xff] %vm1111, %v1639
      %1672 = vst.msk [vmem:[%s197 + $0x58] sm:$0xff] %vm1111, %v1640
      %1673 = vst.msk [vmem:[%s197 + $0x60] sm:$0xff] %vm1111, %v1641
      %1674 = vst.msk [vmem:[%s197 + $0x68] sm:$0xff] %vm1111, %v1642
      %1675 = vst.msk [vmem:[%s197 + $0x70] sm:$0xff] %vm1111, %v1643
      %1676 = vst.msk [vmem:[%s197 + $0x78] sm:$0xff] %vm1111, %v1644
      %1677 = vst.msk [vmem:[%s197 + $0x80] sm:$0xff] %vm1111, %v1645
      %1678 = vst.msk [vmem:[%s197 + $0x88] sm:$0xff] %vm1111, %v1646
      %1679 = vst.msk [vmem:[%s197 + $0x90] sm:$0xff] %vm1111, %v1647
      %1680 = vst.msk [vmem:[%s197 + $0x98] sm:$0xff] %vm1111, %v1648
      %1681 = vst.msk [vmem:[%s197 + $0xa0] sm:$0xff] %vm1111, %v1649
      %1682 = vst.msk [vmem:[%s197 + $0xa8] sm:$0xff] %vm1111, %v1650
      %1683 = vst.msk [vmem:[%s197 + $0xb0] sm:$0xff] %vm1111, %v1651
      %1684 = vst.msk [vmem:[%s197 + $0xb8] sm:$0xff] %vm1111, %v1652
      %1685 = vst.msk [vmem:[%s197 + $0xc0] sm:$0xff] %vm1111, %v1653
      %1686 = vst.msk [vmem:[%s197 + $0xc8] sm:$0xff] %vm1111, %v1654
      %1687 = vst.msk [vmem:[%s197 + $0xd0] sm:$0xff] %vm1111, %v1655
      %1688 = vst.msk [vmem:[%s197 + $0xd8] sm:$0xff] %vm1111, %v1656
      %1689 = vst.msk [vmem:[%s197 + $0xe0] sm:$0xff] %vm1111, %v1657
      %1690 = vst.msk [vmem:[%s197 + $0xe8] sm:$0xff] %vm1111, %v1658
      %1691 = vst.msk [vmem:[%s197 + $0xf0] sm:$0xff] %vm1111, %v1659
      %1692 = vst.msk [vmem:[%s197 + $0xf8] sm:$0xff] %vm1111, %v1660
      %p1693 = scmp.lt.s32.totalorder %s15, 1
      %s1694 = scalar_select %p1693, %s15, 1
      %s1695 = smul.addr %s1694, 32
      %s1696 = smul.addr %s1695, 8
      %s1697 = scalar_lea.vmem %s4, %s1696
      // Predicated region
      $region37: #{separable_conv2d_swish.1} parent=35 // pred_check
        %p1698 = pneg %p122
      $region38: #{separable_conv2d_swish.1} parent=35 // pred_check_branch
        %1700 = sbr.rel (%p1698) target = $region40
      $region39: #{separable_conv2d_swish.1} parent=35 // pred_region
        _
      $region40: #{separable_conv2d_swish.1} parent=35 // pred_fallthru
        _
    $region36: #{separable_conv2d_swish.1} parent=5 // pred_fallthru
      _
    %p1701 = scmp.le.s32.totalorder 2, %s10
    // Predicated region
    $region41: #{separable_conv2d_swish.1} parent=5 // pred_check
      %p1702 = pneg %p1701
    $region42: #{separable_conv2d_swish.1} parent=5 // pred_check_branch
      %1704 = sbr.rel (%p1702) target = $region44
    $region43: #{separable_conv2d_swish.1} parent=5 // pred_region
      %s1705 = ssub.s32 %s10, 2
      // Predicated region
      $region45: #{separable_conv2d_swish.1} parent=43 // pred_check
        %p1706 = pneg %p128
      $region46: #{separable_conv2d_swish.1} parent=43 // pred_check_branch
        %1708 = sbr.rel (%p1706) target = $region48
      $region47: #{separable_conv2d_swish.1} parent=43 // pred_region
        %p1709 = scmp.lt.s32.totalorder %s16, 1
        %s1710 = scalar_select %p1709, %s16, 1
        %s1711 = smul.addr %s1710, 32
        %s1712 = smul.addr %s1711, 8
        %s1713 = scalar_lea.vmem %s4, %s1712
      $region48: #{separable_conv2d_swish.1} parent=43 // pred_fallthru
        _
    $region44: #{separable_conv2d_swish.1} parent=5 // pred_fallthru
      _
  $region6: #{separable_conv2d_swish.1} parent=0 // loop_footer
    %s14 = sadd.s32 1, %s10
  $region7: #{separable_conv2d_swish.1} parent=0 // loop_footer_branch
    %9 = sbr.rel target = $region3
  $region8: #{separable_conv2d_swish.1} parent=0 // loop_exit
    _

</llo_original>
